<compile_context>
chip_gen: v5e
topology: v5e:2x2
jax: 0.10.0
libtpu: 0.0.40
codegen_flags: <defaults>
</compile_context>

<pallas_src>
import jax
import jax.numpy as jnp
from jax import lax
from jax.experimental import pallas as pl
from jax.experimental.pallas import tpu as pltpu

_VMEM_LIMIT = 48 * 1024 * 1024   # headroom below v7x's 64 MiB/TC; conservative on v5e/v6e
_TC_MAX = 16                     # recurrence time-chunk = bounded unroll length


def _round_up(x, m):
    return (x + m - 1) // m * m


def _pick_tile(dim, preferred, align):
    """Largest tile <= min(dim, preferred) that divides dim (requires dim % align == 0)."""
    assert dim % align == 0, (dim, align)
    if dim <= preferred:
        return dim
    t = (preferred // align) * align
    while t > align and dim % t != 0:
        t -= align
    return t   # worst case t == align, which always divides dim (never falls back to dim)


# ---------------------------------------------------------------------------
# Fused GRU stage: per time-chunk input projection + serial recurrence.
#   x_ref   : (Tc*Bp, Ep)    one chunk of time-major embedded tokens
#   wih_ref : (Ep, 3*Hp)     input->hidden weights (gate-padded), VMEM-resident
#   bih_ref : (1, 3*Hp)
#   whh_ref : (Hp, 3*Hp)     hidden->hidden weights (gate-padded), VMEM-resident
#   bhh_ref : (1, 3*Hp)
#   hall_ref: (Tc*Bp, Hp)    output hidden states for this chunk
#   h_ref   : (Bp, Hp)       carried hidden state (persists across grid steps)
#   gi_ref  : (Tc*Bp, 3*Hp)  scratch for this chunk's input projection
# ---------------------------------------------------------------------------
def gru_chunk_kernel(x_ref, wih_ref, bih_ref, whh_ref, bhh_ref,
                     hall_ref, h_ref, gi_ref):
    Bp, Hp = h_ref.shape
    Tc = x_ref.shape[0] // Bp

    # h_0 = 0 (PyTorch default); the scratch carries h across sequential grid steps.
    @pl.when(pl.program_id(0) == 0)
    def _():
        h_ref[...] = jnp.zeros_like(h_ref)

    # Chunk-wide input projection: one big MXU matmul (Tc*Bp rows), no HBM round trip.
    gi_ref[...] = (jnp.dot(x_ref[...], wih_ref[...],
                           preferred_element_type=jnp.float32)
                   + bih_ref[...])

    def step(t, carry):
        row = pl.multiple_of(t * Bp, Bp)
        gi = gi_ref[pl.ds(row, Bp), :]                       # (Bp, 3Hp)
        h_prev = h_ref[...]                                  # (Bp, Hp)
        # NOTE: pltpu.matmul_push_rhs/acc_lhs could keep W_hh staged in the MXU across
        # all steps; plain jnp.dot re-pushes the RHS each step (acceptable at Tc<=16).
        gh = (jnp.dot(h_prev, whh_ref[...],
                      preferred_element_type=jnp.float32)
              + bhh_ref[...])

        i_r, i_z, i_n = gi[:, :Hp], gi[:, Hp:2 * Hp], gi[:, 2 * Hp:]
        h_r, h_z, h_n = gh[:, :Hp], gh[:, Hp:2 * Hp], gh[:, 2 * Hp:]
        r = jax.nn.sigmoid(i_r + h_r)
        z = jax.nn.sigmoid(i_z + h_z)
        n = jnp.tanh(i_n + r * h_n)                          # PyTorch n-gate formula
        h_new = (1.0 - z) * n + z * h_prev

        h_ref[...] = h_new
        hall_ref[pl.ds(row, Bp), :] = h_new
        return carry

    # Bounded unroll: the chunk is at most _TC_MAX steps (T-chunking bounds code size).
    lax.fori_loop(0, Tc, step, 0, unroll=True)


# ---------------------------------------------------------------------------
# Output projection:  out = x @ w + b, with the weight tile resident across row tiles.
# ---------------------------------------------------------------------------
def matmul_bias_kernel(x_ref, w_ref, b_ref, o_ref):
    o_ref[...] = (jnp.dot(x_ref[...], w_ref[...],
                          preferred_element_type=jnp.float32)
                  + b_ref[...]).astype(o_ref.dtype)


def matmul_bias(x, w, b, *, tm_pref=512, tn_pref=512):
    """x: (M, K), w: (K, N), b: (1, N) -> (M, N) f32.  M % 8 == 0, N % 128 == 0."""
    M, K = x.shape
    _, N = w.shape
    TM = _pick_tile(M, tm_pref, 8)
    TN = _pick_tile(N, tn_pref, 128)
    # Grid: vocab tiles outer, row tiles inner -> the (K, TN) weight tile keeps the same
    # block index across the inner axis and is NOT re-streamed from HBM per row tile.
    grid = (N // TN, M // TM)
    return pl.pallas_call(
        matmul_bias_kernel,
        out_shape=jax.ShapeDtypeStruct((M, N), jnp.float32),
        grid_spec=pltpu.PrefetchScalarGridSpec(
            num_scalar_prefetch=0,
            grid=grid,
            in_specs=[
                pl.BlockSpec((TM, K), lambda j, i: (i, 0)),
                pl.BlockSpec((K, TN), lambda j, i: (0, j)),
                pl.BlockSpec((1, TN), lambda j, i: (0, j)),
            ],
            out_specs=pl.BlockSpec((TM, TN), lambda j, i: (i, j)),
        ),
        compiler_params=pltpu.CompilerParams(
            dimension_semantics=("parallel", "parallel"),
            vmem_limit_bytes=_VMEM_LIMIT,
        ),
    )(x, w, b)


# ---------------------------------------------------------------------------
# Wrapper: gather + pad, fused GRU kernel, batch-compaction, fc kernel.
# ---------------------------------------------------------------------------
def simple_language_model(ids, params):
    """ids: (B, T) int32 token indices. Returns logits (B, T, V) float32."""
    B, T = ids.shape
    emb = params["emb"]                       # (V, E)
    V, E = emb.shape
    H = params["whh_t"].shape[0]

    Bp = _round_up(B, 8)                      # sublane floor
    Ep = _round_up(E, 128)                    # lane-aligned contraction dim
    Hp = _round_up(H, 128)                    # lane-aligned gate width
    Vp = _round_up(V, 128)                    # lane-dense logits tiles
    Tc = min(T, _TC_MAX)                      # time chunk per grid step
    Tp = _round_up(T, Tc)                     # padded sequence length

    # --- Embedding: gather directly in time-major layout (no transpose pass) --
    x_tm = emb[ids.T]                                          # (T, B, E) f32
    x_tm = jnp.pad(x_tm, ((0, Tp - T), (0, Bp - B), (0, Ep - E)))
    x2d = x_tm.reshape(Tp * Bp, Ep)                            # row = t*Bp + b

    # --- Pad weights; lay gates out as 3 contiguous Hp-lane chunks ------------
    def pad_gate_w(w, rows_p):                 # (rows, 3H) -> (rows_p, 3*Hp)
        rows = w.shape[0]
        w3 = w.reshape(rows, 3, H)
        w3 = jnp.pad(w3, ((0, rows_p - rows), (0, 0), (0, Hp - H)))
        return w3.reshape(rows_p, 3 * Hp)

    def pad_gate_b(b):                         # (1, 3H) -> (1, 3*Hp)
        b3 = b.reshape(1, 3, H)
        b3 = jnp.pad(b3, ((0, 0), (0, 0), (0, Hp - H)))
        return b3.reshape(1, 3 * Hp)

    wih_p = pad_gate_w(params["wih_t"], Ep)                    # (Ep, 3Hp)
    whh_p = pad_gate_w(params["whh_t"], Hp)                    # (Hp, 3Hp)
    bih_p = pad_gate_b(params["bih"])                          # (1, 3Hp)
    bhh_p = pad_gate_b(params["bhh"])                          # (1, 3Hp)
    wfc_p = jnp.pad(params["wfc_t"], ((0, Hp - H), (0, Vp - V)))   # (Hp, Vp)
    bfc_p = jnp.pad(params["bfc"], ((0, 0), (0, Vp - V)))          # (1, Vp)

    # --- Fused input projection + serial recurrence, chunked over time --------
    n_chunks = Tp // Tc
    h_all = pl.pallas_call(
        gru_chunk_kernel,
        out_shape=jax.ShapeDtypeStruct((Tp * Bp, Hp), jnp.float32),
        grid_spec=pltpu.PrefetchScalarGridSpec(
            num_scalar_prefetch=0,
            grid=(n_chunks,),
            in_specs=[
                pl.BlockSpec((Tc * Bp, Ep), lambda i: (i, 0)),     # x chunk (pipelined)
                pl.BlockSpec((Ep, 3 * Hp), lambda i: (0, 0)),      # W_ih (resident)
                pl.BlockSpec((1, 3 * Hp), lambda i: (0, 0)),       # b_ih
                pl.BlockSpec((Hp, 3 * Hp), lambda i: (0, 0)),      # W_hh (resident)
                pl.BlockSpec((1, 3 * Hp), lambda i: (0, 0)),       # b_hh
            ],
            out_specs=pl.BlockSpec((Tc * Bp, Hp), lambda i: (i, 0)),
            scratch_shapes=[
                pltpu.VMEM((Bp, Hp), jnp.float32),           # carried hidden state
                pltpu.VMEM((Tc * Bp, 3 * Hp), jnp.float32),  # chunk input projection
            ],
        ),
        compiler_params=pltpu.CompilerParams(
            # Sequential recurrence: the h scratch carries state across grid steps.
            # TODO(synk): on v7x a core-parallel batch split (needs Bp >= 16) could use
            # the second TensorCore for the recurrence; skipped at this batch size.
            dimension_semantics=("arbitrary",),
            vmem_limit_bytes=_VMEM_LIMIT,
        ),
    )(x2d, wih_p, bih_p, whh_p, bhh_p)

    # --- Compact padded batch rows & switch to batch-major before the fc ------
    # (transposes the small (T, B, Hp) tensor so the big logits need no transpose)
    h_bm = jnp.transpose(h_all.reshape(Tp, Bp, Hp)[:T, :B, :], (1, 0, 2))
    h_bm = h_bm.reshape(B * T, Hp)
    M3 = _round_up(B * T, 8)
    h_bm = jnp.pad(h_bm, ((0, M3 - B * T), (0, 0)))            # (M3, Hp)

    # --- Output projection: batch-major rows x vocab, weight-resident tiling --
    logits2d = matmul_bias(h_bm, wfc_p, bfc_p)                 # (M3, Vp)
    return logits2d[:B * T].reshape(B, T, Vp)[:, :, :V]        # (B, T, V)


# ---------------------------------------------------------------------------
# Params / reference
# ---------------------------------------------------------------------------
def init_params(key, vocab_size, embedding_dim, hidden_dim):
    """Deterministic synthetic init, shapes match the PyTorch module."""
    k = jax.random.split(key, 7)
    s = 1.0 / float(hidden_dim) ** 0.5
    emb = jax.random.normal(k[0], (vocab_size, embedding_dim), jnp.float32)
    wih = jax.random.uniform(k[1], (3 * hidden_dim, embedding_dim), jnp.float32, -s, s)
    whh = jax.random.uniform(k[2], (3 * hidden_dim, hidden_dim), jnp.float32, -s, s)
    bih = jax.random.uniform(k[3], (3 * hidden_dim,), jnp.float32, -s, s)
    bhh = jax.random.uniform(k[4], (3 * hidden_dim,), jnp.float32, -s, s)
    wfc = jax.random.uniform(k[5], (vocab_size, hidden_dim), jnp.float32, -s, s)
    bfc = jax.random.uniform(k[6], (vocab_size,), jnp.float32, -s, s)
    return dict(
        emb=emb,
        wih_t=wih.T, whh_t=whh.T,
        bih=bih.reshape(1, -1), bhh=bhh.reshape(1, -1),
        wfc_t=wfc.T, bfc=bfc.reshape(1, -1),
    )


def reference_forward(ids, params):
    """Pure-JAX reference implementing the same PyTorch GRU semantics."""
    emb = params["emb"]
    H = params["whh_t"].shape[0]
    B, T = ids.shape
    x = emb[ids]  # (B, T, E)

    def cell(h, x_t):
        gi = x_t @ params["wih_t"] + params["bih"]
        gh = h @ params["whh_t"] + params["bhh"]
        i_r, i_z, i_n = gi[:, :H], gi[:, H:2 * H], gi[:, 2 * H:]
        h_r, h_z, h_n = gh[:, :H], gh[:, H:2 * H], gh[:, 2 * H:]
        r = jax.nn.sigmoid(i_r + h_r)
        z = jax.nn.sigmoid(i_z + h_z)
        n = jnp.tanh(i_n + r * h_n)
        h_new = (1.0 - z) * n + z * h
        return h_new, h_new

    h0 = jnp.zeros((B, H), jnp.float32)
    _, hs = lax.scan(cell, h0, jnp.transpose(x, (1, 0, 2)))  # (T, B, H)
    logits = hs @ params["wfc_t"] + params["bfc"]            # (T, B, V)
    return jnp.transpose(logits, (1, 0, 2))                  # (B, T, V)


if __name__ == "__main__":
    vocab_size, embedding_dim, hidden_dim = 32, 16, 32
    batch, seq = 2, 8

    key = jax.random.PRNGKey(0)
    k_param, k_ids = jax.random.split(key)
    params = init_params(k_param, vocab_size, embedding_dim, hidden_dim)
    ids = jax.random.randint(k_ids, (batch, seq), 0, vocab_size, dtype=jnp.int32)

    logits = simple_language_model(ids, params)
    jax.block_until_ready(logits)

    ref = reference_forward(ids, params)
    assert logits.shape == (batch, seq, vocab_size), logits.shape
    assert jnp.allclose(logits, ref, atol=1e-4, rtol=1e-4), (
        float(jnp.max(jnp.abs(logits - ref))))

    print("KERNEL_OK")
</pallas_src>

<mosaic_0001>
module attributes {stable_mosaic.version = 11 : i64} {
  func.func @gru_chunk_kernel(%arg0: i32, %arg1: memref<64x128xf32, #tpu.memory_space<vmem>>, %arg2: memref<128x384xf32, #tpu.memory_space<vmem>>, %arg3: memref<1x384xf32, #tpu.memory_space<vmem>>, %arg4: memref<128x384xf32, #tpu.memory_space<vmem>>, %arg5: memref<1x384xf32, #tpu.memory_space<vmem>>, %arg6: memref<64x128xf32, #tpu.memory_space<vmem>>, %arg7: memref<8x128xf32, #tpu.memory_space<vmem>>, %arg8: memref<64x384xf32, #tpu.memory_space<vmem>>) attributes {dimension_semantics = [#tpu.dimension_semantics<arbitrary>], iteration_bounds = array<i64: 1>, scalar_prefetch = 0 : i64, scratch_operands = 2 : i64, tpu.core_type = #tpu.core_type<tc>, window_params = [{transform_indices = @transform_0, window_bounds = array<i64: 64, 128>}, {pipeline_mode = #tpu.pipeline_mode<synchronous>, transform_indices = @transform_1, window_bounds = array<i64: 128, 384>}, {pipeline_mode = #tpu.pipeline_mode<synchronous>, transform_indices = @transform_2, window_bounds = array<i64: 1, 384>}, {pipeline_mode = #tpu.pipeline_mode<synchronous>, transform_indices = @transform_3, window_bounds = array<i64: 128, 384>}, {pipeline_mode = #tpu.pipeline_mode<synchronous>, transform_indices = @transform_4, window_bounds = array<i64: 1, 384>}, {transform_indices = @transform_5, window_bounds = array<i64: 64, 128>}]} {
    %c0_i32 = arith.constant 0 : i32
    %0 = arith.cmpi eq, %arg0, %c0_i32 : i32
    %1 = arith.extui %0 : i1 to i32
    %c0_i32_0 = arith.constant 0 : i32
    %2 = arith.cmpi ne, %1, %c0_i32_0 : i32
    scf.if %2 {
      %cst_129 = arith.constant 0.000000e+00 : f32
      %322 = vector.broadcast %cst_129 : f32 to vector<8x128xf32>
      %c0_130 = arith.constant 0 : index
      %c0_131 = arith.constant 0 : index
      %323 = vector.load %arg7[%c0_130, %c0_131] : memref<8x128xf32, #tpu.memory_space<vmem>>, vector<8x128xf32>
      tpu.vector_store %arg7[%c0_130, %c0_131], %322 {strides = array<i32>} : memref<8x128xf32, #tpu.memory_space<vmem>>, vector<8x128xf32>,
    } else {
    }
    %c0 = arith.constant 0 : index
    %c0_1 = arith.constant 0 : index
    %3 = vector.load %arg1[%c0, %c0_1] : memref<64x128xf32, #tpu.memory_space<vmem>>, vector<64x128xf32>
    %c0_2 = arith.constant 0 : index
    %c0_3 = arith.constant 0 : index
    %4 = vector.load %arg2[%c0_2, %c0_3] : memref<128x384xf32, #tpu.memory_space<vmem>>, vector<128x384xf32>
    %cst = arith.constant dense<0.000000e+00> : vector<64x384xf32>
    %5 = tpu.matmul %3, %4, %cst {dimension_numbers = #tpu.dot_dimension_numbers<[1], [0], [0], [1], [0, 0, 1, 1], [], []>} : vector<64x128xf32>, vector<128x384xf32>, vector<64x384xf32> -> vector<64x384xf32>
    %c0_4 = arith.constant 0 : index
    %c0_5 = arith.constant 0 : index
    %6 = vector.load %arg3[%c0_4, %c0_5] : memref<1x384xf32, #tpu.memory_space<vmem>>, vector<1x384xf32>
    %7 = vector.broadcast %6 : vector<1x384xf32> to vector<64x384xf32>
    %8 = arith.addf %5, %7 : vector<64x384xf32>
    %c0_6 = arith.constant 0 : index
    %c0_7 = arith.constant 0 : index
    %9 = vector.load %arg8[%c0_6, %c0_7] : memref<64x384xf32, #tpu.memory_space<vmem>>, vector<64x384xf32>
    tpu.vector_store %arg8[%c0_6, %c0_7], %8 {strides = array<i32>} : memref<64x384xf32, #tpu.memory_space<vmem>>, vector<64x384xf32>,
    %c0_i32_8 = arith.constant 0 : i32
    %c8_i32 = arith.constant 8 : i32
    %10 = arith.muli %c0_i32_8, %c8_i32 : i32
    %11 = tpu.assume_multiple %10, 8 : i32
    %12 = arith.index_cast %11 : i32 to index
    %c0_9 = arith.constant 0 : index
    %13 = vector.load %arg8[%12, %c0_9] : memref<64x384xf32, #tpu.memory_space<vmem>>, vector<8x384xf32>
    %c0_10 = arith.constant 0 : index
    %c0_11 = arith.constant 0 : index
    %14 = vector.load %arg7[%c0_10, %c0_11] : memref<8x128xf32, #tpu.memory_space<vmem>>, vector<8x128xf32>
    %c0_12 = arith.constant 0 : index
    %c0_13 = arith.constant 0 : index
    %15 = vector.load %arg4[%c0_12, %c0_13] : memref<128x384xf32, #tpu.memory_space<vmem>>, vector<128x384xf32>
    %cst_14 = arith.constant dense<0.000000e+00> : vector<8x384xf32>
    %16 = tpu.matmul %14, %15, %cst_14 {dimension_numbers = #tpu.dot_dimension_numbers<[1], [0], [0], [1], [0, 0, 1, 1], [], []>} : vector<8x128xf32>, vector<128x384xf32>, vector<8x384xf32> -> vector<8x384xf32>
    %c0_15 = arith.constant 0 : index
    %c0_16 = arith.constant 0 : index
    %17 = vector.load %arg5[%c0_15, %c0_16] : memref<1x384xf32, #tpu.memory_space<vmem>>, vector<1x384xf32>
    %18 = vector.broadcast %17 : vector<1x384xf32> to vector<8x384xf32>
    %19 = arith.addf %16, %18 : vector<8x384xf32>
    %20 = vector.extract_strided_slice %13 {offsets = [0, 0], sizes = [8, 128], strides = [1, 1]} : vector<8x384xf32> to vector<8x128xf32>
    %21 = vector.extract_strided_slice %13 {offsets = [0, 128], sizes = [8, 128], strides = [1, 1]} : vector<8x384xf32> to vector<8x128xf32>
    %22 = vector.extract_strided_slice %13 {offsets = [0, 256], sizes = [8, 128], strides = [1, 1]} : vector<8x384xf32> to vector<8x128xf32>
    %23 = vector.extract_strided_slice %19 {offsets = [0, 0], sizes = [8, 128], strides = [1, 1]} : vector<8x384xf32> to vector<8x128xf32>
    %24 = vector.extract_strided_slice %19 {offsets = [0, 128], sizes = [8, 128], strides = [1, 1]} : vector<8x384xf32> to vector<8x128xf32>
    %25 = vector.extract_strided_slice %19 {offsets = [0, 256], sizes = [8, 128], strides = [1, 1]} : vector<8x384xf32> to vector<8x128xf32>
    %26 = arith.addf %20, %23 : vector<8x128xf32>
    %27 = arith.negf %26 : vector<8x128xf32>
    %28 = math.exp %27 : vector<8x128xf32>
    %cst_17 = arith.constant 1.000000e+00 : f32
    %29 = vector.broadcast %cst_17 : f32 to vector<8x128xf32>
    %30 = arith.addf %29, %28 : vector<8x128xf32>
    %31 = arith.divf %29, %30 : vector<8x128xf32>
    %32 = arith.addf %21, %24 : vector<8x128xf32>
    %33 = arith.negf %32 : vector<8x128xf32>
    %34 = math.exp %33 : vector<8x128xf32>
    %cst_18 = arith.constant 1.000000e+00 : f32
    %35 = vector.broadcast %cst_18 : f32 to vector<8x128xf32>
    %36 = arith.addf %35, %34 : vector<8x128xf32>
    %37 = arith.divf %35, %36 : vector<8x128xf32>
    %38 = arith.mulf %31, %25 : vector<8x128xf32>
    %39 = arith.addf %22, %38 : vector<8x128xf32>
    %40 = math.tanh %39 : vector<8x128xf32>
    %cst_19 = arith.constant 1.000000e+00 : f32
    %41 = vector.broadcast %cst_19 : f32 to vector<8x128xf32>
    %42 = arith.subf %41, %37 : vector<8x128xf32>
    %43 = arith.mulf %42, %40 : vector<8x128xf32>
    %44 = arith.mulf %37, %14 : vector<8x128xf32>
    %45 = arith.addf %43, %44 : vector<8x128xf32>
    %c0_20 = arith.constant 0 : index
    %c0_21 = arith.constant 0 : index
    %46 = vector.load %arg7[%c0_20, %c0_21] : memref<8x128xf32, #tpu.memory_space<vmem>>, vector<8x128xf32>
    tpu.vector_store %arg7[%c0_20, %c0_21], %45 {strides = array<i32>} : memref<8x128xf32, #tpu.memory_space<vmem>>, vector<8x128xf32>,
    %47 = arith.index_cast %11 : i32 to index
    %c0_22 = arith.constant 0 : index
    %48 = vector.load %arg6[%47, %c0_22] : memref<64x128xf32, #tpu.memory_space<vmem>>, vector<8x128xf32>
    tpu.vector_store %arg6[%47, %c0_22], %45 {strides = array<i32>} : memref<64x128xf32, #tpu.memory_space<vmem>>, vector<8x128xf32>,
    %c1_i32 = arith.constant 1 : i32
    %c8_i32_23 = arith.constant 8 : i32
    %49 = arith.muli %c1_i32, %c8_i32_23 : i32
    %50 = tpu.assume_multiple %49, 8 : i32
    %51 = arith.index_cast %50 : i32 to index
    %c0_24 = arith.constant 0 : index
    %52 = vector.load %arg8[%51, %c0_24] : memref<64x384xf32, #tpu.memory_space<vmem>>, vector<8x384xf32>
    %c0_25 = arith.constant 0 : index
    %c0_26 = arith.constant 0 : index
    %53 = vector.load %arg7[%c0_25, %c0_26] : memref<8x128xf32, #tpu.memory_space<vmem>>, vector<8x128xf32>
    %c0_27 = arith.constant 0 : index
    %c0_28 = arith.constant 0 : index
    %54 = vector.load %arg4[%c0_27, %c0_28] : memref<128x384xf32, #tpu.memory_space<vmem>>, vector<128x384xf32>
    %cst_29 = arith.constant dense<0.000000e+00> : vector<8x384xf32>
    %55 = tpu.matmul %53, %54, %cst_29 {dimension_numbers = #tpu.dot_dimension_numbers<[1], [0], [0], [1], [0, 0, 1, 1], [], []>} : vector<8x128xf32>, vector<128x384xf32>, vector<8x384xf32> -> vector<8x384xf32>
    %c0_30 = arith.constant 0 : index
    %c0_31 = arith.constant 0 : index
    %56 = vector.load %arg5[%c0_30, %c0_31] : memref<1x384xf32, #tpu.memory_space<vmem>>, vector<1x384xf32>
    %57 = vector.broadcast %56 : vector<1x384xf32> to vector<8x384xf32>
    %58 = arith.addf %55, %57 : vector<8x384xf32>
    %59 = vector.extract_strided_slice %52 {offsets = [0, 0], sizes = [8, 128], strides = [1, 1]} : vector<8x384xf32> to vector<8x128xf32>
    %60 = vector.extract_strided_slice %52 {offsets = [0, 128], sizes = [8, 128], strides = [1, 1]} : vector<8x384xf32> to vector<8x128xf32>
    %61 = vector.extract_strided_slice %52 {offsets = [0, 256], sizes = [8, 128], strides = [1, 1]} : vector<8x384xf32> to vector<8x128xf32>
    %62 = vector.extract_strided_slice %58 {offsets = [0, 0], sizes = [8, 128], strides = [1, 1]} : vector<8x384xf32> to vector<8x128xf32>
    %63 = vector.extract_strided_slice %58 {offsets = [0, 128], sizes = [8, 128], strides = [1, 1]} : vector<8x384xf32> to vector<8x128xf32>
    %64 = vector.extract_strided_slice %58 {offsets = [0, 256], sizes = [8, 128], strides = [1, 1]} : vector<8x384xf32> to vector<8x128xf32>
    %65 = arith.addf %59, %62 : vector<8x128xf32>
    %66 = arith.negf %65 : vector<8x128xf32>
    %67 = math.exp %66 : vector<8x128xf32>
    %cst_32 = arith.constant 1.000000e+00 : f32
    %68 = vector.broadcast %cst_32 : f32 to vector<8x128xf32>
    %69 = arith.addf %68, %67 : vector<8x128xf32>
    %70 = arith.divf %68, %69 : vector<8x128xf32>
    %71 = arith.addf %60, %63 : vector<8x128xf32>
    %72 = arith.negf %71 : vector<8x128xf32>
    %73 = math.exp %72 : vector<8x128xf32>
    %cst_33 = arith.constant 1.000000e+00 : f32
    %74 = vector.broadcast %cst_33 : f32 to vector<8x128xf32>
    %75 = arith.addf %74, %73 : vector<8x128xf32>
    %76 = arith.divf %74, %75 : vector<8x128xf32>
    %77 = arith.mulf %70, %64 : vector<8x128xf32>
    %78 = arith.addf %61, %77 : vector<8x128xf32>
    %79 = math.tanh %78 : vector<8x128xf32>
    %cst_34 = arith.constant 1.000000e+00 : f32
    %80 = vector.broadcast %cst_34 : f32 to vector<8x128xf32>
    %81 = arith.subf %80, %76 : vector<8x128xf32>
    %82 = arith.mulf %81, %79 : vector<8x128xf32>
    %83 = arith.mulf %76, %53 : vector<8x128xf32>
    %84 = arith.addf %82, %83 : vector<8x128xf32>
    %c0_35 = arith.constant 0 : index
    %c0_36 = arith.constant 0 : index
    %85 = vector.load %arg7[%c0_35, %c0_36] : memref<8x128xf32, #tpu.memory_space<vmem>>, vector<8x128xf32>
    tpu.vector_store %arg7[%c0_35, %c0_36], %84 {strides = array<i32>} : memref<8x128xf32, #tpu.memory_space<vmem>>, vector<8x128xf32>,
    %86 = arith.index_cast %50 : i32 to index
    %c0_37 = arith.constant 0 : index
    %87 = vector.load %arg6[%86, %c0_37] : memref<64x128xf32, #tpu.memory_space<vmem>>, vector<8x128xf32>
    tpu.vector_store %arg6[%86, %c0_37], %84 {strides = array<i32>} : memref<64x128xf32, #tpu.memory_space<vmem>>, vector<8x128xf32>,
    %c2_i32 = arith.constant 2 : i32
    %c8_i32_38 = arith.constant 8 : i32
    %88 = arith.muli %c2_i32, %c8_i32_38 : i32
    %89 = tpu.assume_multiple %88, 8 : i32
    %90 = arith.index_cast %89 : i32 to index
    %c0_39 = arith.constant 0 : index
    %91 = vector.load %arg8[%90, %c0_39] : memref<64x384xf32, #tpu.memory_space<vmem>>, vector<8x384xf32>
    %c0_40 = arith.constant 0 : index
    %c0_41 = arith.constant 0 : index
    %92 = vector.load %arg7[%c0_40, %c0_41] : memref<8x128xf32, #tpu.memory_space<vmem>>, vector<8x128xf32>
    %c0_42 = arith.constant 0 : index
    %c0_43 = arith.constant 0 : index
    %93 = vector.load %arg4[%c0_42, %c0_43] : memref<128x384xf32, #tpu.memory_space<vmem>>, vector<128x384xf32>
    %cst_44 = arith.constant dense<0.000000e+00> : vector<8x384xf32>
    %94 = tpu.matmul %92, %93, %cst_44 {dimension_numbers = #tpu.dot_dimension_numbers<[1], [0], [0], [1], [0, 0, 1, 1], [], []>} : vector<8x128xf32>, vector<128x384xf32>, vector<8x384xf32> -> vector<8x384xf32>
    %c0_45 = arith.constant 0 : index
    %c0_46 = arith.constant 0 : index
    %95 = vector.load %arg5[%c0_45, %c0_46] : memref<1x384xf32, #tpu.memory_space<vmem>>, vector<1x384xf32>
    %96 = vector.broadcast %95 : vector<1x384xf32> to vector<8x384xf32>
    %97 = arith.addf %94, %96 : vector<8x384xf32>
    %98 = vector.extract_strided_slice %91 {offsets = [0, 0], sizes = [8, 128], strides = [1, 1]} : vector<8x384xf32> to vector<8x128xf32>
    %99 = vector.extract_strided_slice %91 {offsets = [0, 128], sizes = [8, 128], strides = [1, 1]} : vector<8x384xf32> to vector<8x128xf32>
    %100 = vector.extract_strided_slice %91 {offsets = [0, 256], sizes = [8, 128], strides = [1, 1]} : vector<8x384xf32> to vector<8x128xf32>
    %101 = vector.extract_strided_slice %97 {offsets = [0, 0], sizes = [8, 128], strides = [1, 1]} : vector<8x384xf32> to vector<8x128xf32>
    %102 = vector.extract_strided_slice %97 {offsets = [0, 128], sizes = [8, 128], strides = [1, 1]} : vector<8x384xf32> to vector<8x128xf32>
    %103 = vector.extract_strided_slice %97 {offsets = [0, 256], sizes = [8, 128], strides = [1, 1]} : vector<8x384xf32> to vector<8x128xf32>
    %104 = arith.addf %98, %101 : vector<8x128xf32>
    %105 = arith.negf %104 : vector<8x128xf32>
    %106 = math.exp %105 : vector<8x128xf32>
    %cst_47 = arith.constant 1.000000e+00 : f32
    %107 = vector.broadcast %cst_47 : f32 to vector<8x128xf32>
    %108 = arith.addf %107, %106 : vector<8x128xf32>
    %109 = arith.divf %107, %108 : vector<8x128xf32>
    %110 = arith.addf %99, %102 : vector<8x128xf32>
    %111 = arith.negf %110 : vector<8x128xf32>
    %112 = math.exp %111 : vector<8x128xf32>
    %cst_48 = arith.constant 1.000000e+00 : f32
    %113 = vector.broadcast %cst_48 : f32 to vector<8x128xf32>
    %114 = arith.addf %113, %112 : vector<8x128xf32>
    %115 = arith.divf %113, %114 : vector<8x128xf32>
    %116 = arith.mulf %109, %103 : vector<8x128xf32>
    %117 = arith.addf %100, %116 : vector<8x128xf32>
    %118 = math.tanh %117 : vector<8x128xf32>
    %cst_49 = arith.constant 1.000000e+00 : f32
    %119 = vector.broadcast %cst_49 : f32 to vector<8x128xf32>
    %120 = arith.subf %119, %115 : vector<8x128xf32>
    %121 = arith.mulf %120, %118 : vector<8x128xf32>
    %122 = arith.mulf %115, %92 : vector<8x128xf32>
    %123 = arith.addf %121, %122 : vector<8x128xf32>
    %c0_50 = arith.constant 0 : index
    %c0_51 = arith.constant 0 : index
    %124 = vector.load %arg7[%c0_50, %c0_51] : memref<8x128xf32, #tpu.memory_space<vmem>>, vector<8x128xf32>
    tpu.vector_store %arg7[%c0_50, %c0_51], %123 {strides = array<i32>} : memref<8x128xf32, #tpu.memory_space<vmem>>, vector<8x128xf32>,
    %125 = arith.index_cast %89 : i32 to index
    %c0_52 = arith.constant 0 : index
    %126 = vector.load %arg6[%125, %c0_52] : memref<64x128xf32, #tpu.memory_space<vmem>>, vector<8x128xf32>
    tpu.vector_store %arg6[%125, %c0_52], %123 {strides = array<i32>} : memref<64x128xf32, #tpu.memory_space<vmem>>, vector<8x128xf32>,
    %c3_i32 = arith.constant 3 : i32
    %c8_i32_53 = arith.constant 8 : i32
    %127 = arith.muli %c3_i32, %c8_i32_53 : i32
    %128 = tpu.assume_multiple %127, 8 : i32
    %129 = arith.index_cast %128 : i32 to index
    %c0_54 = arith.constant 0 : index
    %130 = vector.load %arg8[%129, %c0_54] : memref<64x384xf32, #tpu.memory_space<vmem>>, vector<8x384xf32>
    %c0_55 = arith.constant 0 : index
    %c0_56 = arith.constant 0 : index
    %131 = vector.load %arg7[%c0_55, %c0_56] : memref<8x128xf32, #tpu.memory_space<vmem>>, vector<8x128xf32>
    %c0_57 = arith.constant 0 : index
    %c0_58 = arith.constant 0 : index
    %132 = vector.load %arg4[%c0_57, %c0_58] : memref<128x384xf32, #tpu.memory_space<vmem>>, vector<128x384xf32>
    %cst_59 = arith.constant dense<0.000000e+00> : vector<8x384xf32>
    %133 = tpu.matmul %131, %132, %cst_59 {dimension_numbers = #tpu.dot_dimension_numbers<[1], [0], [0], [1], [0, 0, 1, 1], [], []>} : vector<8x128xf32>, vector<128x384xf32>, vector<8x384xf32> -> vector<8x384xf32>
    %c0_60 = arith.constant 0 : index
    %c0_61 = arith.constant 0 : index
    %134 = vector.load %arg5[%c0_60, %c0_61] : memref<1x384xf32, #tpu.memory_space<vmem>>, vector<1x384xf32>
    %135 = vector.broadcast %134 : vector<1x384xf32> to vector<8x384xf32>
    %136 = arith.addf %133, %135 : vector<8x384xf32>
    %137 = vector.extract_strided_slice %130 {offsets = [0, 0], sizes = [8, 128], strides = [1, 1]} : vector<8x384xf32> to vector<8x128xf32>
    %138 = vector.extract_strided_slice %130 {offsets = [0, 128], sizes = [8, 128], strides = [1, 1]} : vector<8x384xf32> to vector<8x128xf32>
    %139 = vector.extract_strided_slice %130 {offsets = [0, 256], sizes = [8, 128], strides = [1, 1]} : vector<8x384xf32> to vector<8x128xf32>
    %140 = vector.extract_strided_slice %136 {offsets = [0, 0], sizes = [8, 128], strides = [1, 1]} : vector<8x384xf32> to vector<8x128xf32>
    %141 = vector.extract_strided_slice %136 {offsets = [0, 128], sizes = [8, 128], strides = [1, 1]} : vector<8x384xf32> to vector<8x128xf32>
    %142 = vector.extract_strided_slice %136 {offsets = [0, 256], sizes = [8, 128], strides = [1, 1]} : vector<8x384xf32> to vector<8x128xf32>
    %143 = arith.addf %137, %140 : vector<8x128xf32>
    %144 = arith.negf %143 : vector<8x128xf32>
    %145 = math.exp %144 : vector<8x128xf32>
    %cst_62 = arith.constant 1.000000e+00 : f32
    %146 = vector.broadcast %cst_62 : f32 to vector<8x128xf32>
    %147 = arith.addf %146, %145 : vector<8x128xf32>
    %148 = arith.divf %146, %147 : vector<8x128xf32>
    %149 = arith.addf %138, %141 : vector<8x128xf32>
    %150 = arith.negf %149 : vector<8x128xf32>
    %151 = math.exp %150 : vector<8x128xf32>
    %cst_63 = arith.constant 1.000000e+00 : f32
    %152 = vector.broadcast %cst_63 : f32 to vector<8x128xf32>
    %153 = arith.addf %152, %151 : vector<8x128xf32>
    %154 = arith.divf %152, %153 : vector<8x128xf32>
    %155 = arith.mulf %148, %142 : vector<8x128xf32>
    %156 = arith.addf %139, %155 : vector<8x128xf32>
    %157 = math.tanh %156 : vector<8x128xf32>
    %cst_64 = arith.constant 1.000000e+00 : f32
    %158 = vector.broadcast %cst_64 : f32 to vector<8x128xf32>
    %159 = arith.subf %158, %154 : vector<8x128xf32>
    %160 = arith.mulf %159, %157 : vector<8x128xf32>
    %161 = arith.mulf %154, %131 : vector<8x128xf32>
    %162 = arith.addf %160, %161 : vector<8x128xf32>
    %c0_65 = arith.constant 0 : index
    %c0_66 = arith.constant 0 : index
    %163 = vector.load %arg7[%c0_65, %c0_66] : memref<8x128xf32, #tpu.memory_space<vmem>>, vector<8x128xf32>
    tpu.vector_store %arg7[%c0_65, %c0_66], %162 {strides = array<i32>} : memref<8x128xf32, #tpu.memory_space<vmem>>, vector<8x128xf32>,
    %164 = arith.index_cast %128 : i32 to index
    %c0_67 = arith.constant 0 : index
    %165 = vector.load %arg6[%164, %c0_67] : memref<64x128xf32, #tpu.memory_space<vmem>>, vector<8x128xf32>
    tpu.vector_store %arg6[%164, %c0_67], %162 {strides = array<i32>} : memref<64x128xf32, #tpu.memory_space<vmem>>, vector<8x128xf32>,
    %c4_i32 = arith.constant 4 : i32
    %c8_i32_68 = arith.constant 8 : i32
    %166 = arith.muli %c4_i32, %c8_i32_68 : i32
    %167 = tpu.assume_multiple %166, 8 : i32
    %168 = arith.index_cast %167 : i32 to index
    %c0_69 = arith.constant 0 : index
    %169 = vector.load %arg8[%168, %c0_69] : memref<64x384xf32, #tpu.memory_space<vmem>>, vector<8x384xf32>
    %c0_70 = arith.constant 0 : index
    %c0_71 = arith.constant 0 : index
    %170 = vector.load %arg7[%c0_70, %c0_71] : memref<8x128xf32, #tpu.memory_space<vmem>>, vector<8x128xf32>
    %c0_72 = arith.constant 0 : index
    %c0_73 = arith.constant 0 : index
    %171 = vector.load %arg4[%c0_72, %c0_73] : memref<128x384xf32, #tpu.memory_space<vmem>>, vector<128x384xf32>
    %cst_74 = arith.constant dense<0.000000e+00> : vector<8x384xf32>
    %172 = tpu.matmul %170, %171, %cst_74 {dimension_numbers = #tpu.dot_dimension_numbers<[1], [0], [0], [1], [0, 0, 1, 1], [], []>} : vector<8x128xf32>, vector<128x384xf32>, vector<8x384xf32> -> vector<8x384xf32>
    %c0_75 = arith.constant 0 : index
    %c0_76 = arith.constant 0 : index
    %173 = vector.load %arg5[%c0_75, %c0_76] : memref<1x384xf32, #tpu.memory_space<vmem>>, vector<1x384xf32>
    %174 = vector.broadcast %173 : vector<1x384xf32> to vector<8x384xf32>
    %175 = arith.addf %172, %174 : vector<8x384xf32>
    %176 = vector.extract_strided_slice %169 {offsets = [0, 0], sizes = [8, 128], strides = [1, 1]} : vector<8x384xf32> to vector<8x128xf32>
    %177 = vector.extract_strided_slice %169 {offsets = [0, 128], sizes = [8, 128], strides = [1, 1]} : vector<8x384xf32> to vector<8x128xf32>
    %178 = vector.extract_strided_slice %169 {offsets = [0, 256], sizes = [8, 128], strides = [1, 1]} : vector<8x384xf32> to vector<8x128xf32>
    %179 = vector.extract_strided_slice %175 {offsets = [0, 0], sizes = [8, 128], strides = [1, 1]} : vector<8x384xf32> to vector<8x128xf32>
    %180 = vector.extract_strided_slice %175 {offsets = [0, 128], sizes = [8, 128], strides = [1, 1]} : vector<8x384xf32> to vector<8x128xf32>
    %181 = vector.extract_strided_slice %175 {offsets = [0, 256], sizes = [8, 128], strides = [1, 1]} : vector<8x384xf32> to vector<8x128xf32>
    %182 = arith.addf %176, %179 : vector<8x128xf32>
    %183 = arith.negf %182 : vector<8x128xf32>
    %184 = math.exp %183 : vector<8x128xf32>
    %cst_77 = arith.constant 1.000000e+00 : f32
    %185 = vector.broadcast %cst_77 : f32 to vector<8x128xf32>
    %186 = arith.addf %185, %184 : vector<8x128xf32>
    %187 = arith.divf %185, %186 : vector<8x128xf32>
    %188 = arith.addf %177, %180 : vector<8x128xf32>
    %189 = arith.negf %188 : vector<8x128xf32>
    %190 = math.exp %189 : vector<8x128xf32>
    %cst_78 = arith.constant 1.000000e+00 : f32
    %191 = vector.broadcast %cst_78 : f32 to vector<8x128xf32>
    %192 = arith.addf %191, %190 : vector<8x128xf32>
    %193 = arith.divf %191, %192 : vector<8x128xf32>
    %194 = arith.mulf %187, %181 : vector<8x128xf32>
    %195 = arith.addf %178, %194 : vector<8x128xf32>
    %196 = math.tanh %195 : vector<8x128xf32>
    %cst_79 = arith.constant 1.000000e+00 : f32
    %197 = vector.broadcast %cst_79 : f32 to vector<8x128xf32>
    %198 = arith.subf %197, %193 : vector<8x128xf32>
    %199 = arith.mulf %198, %196 : vector<8x128xf32>
    %200 = arith.mulf %193, %170 : vector<8x128xf32>
    %201 = arith.addf %199, %200 : vector<8x128xf32>
    %c0_80 = arith.constant 0 : index
    %c0_81 = arith.constant 0 : index
    %202 = vector.load %arg7[%c0_80, %c0_81] : memref<8x128xf32, #tpu.memory_space<vmem>>, vector<8x128xf32>
    tpu.vector_store %arg7[%c0_80, %c0_81], %201 {strides = array<i32>} : memref<8x128xf32, #tpu.memory_space<vmem>>, vector<8x128xf32>,
    %203 = arith.index_cast %167 : i32 to index
    %c0_82 = arith.constant 0 : index
    %204 = vector.load %arg6[%203, %c0_82] : memref<64x128xf32, #tpu.memory_space<vmem>>, vector<8x128xf32>
    tpu.vector_store %arg6[%203, %c0_82], %201 {strides = array<i32>} : memref<64x128xf32, #tpu.memory_space<vmem>>, vector<8x128xf32>,
    %c5_i32 = arith.constant 5 : i32
    %c8_i32_83 = arith.constant 8 : i32
    %205 = arith.muli %c5_i32, %c8_i32_83 : i32
    %206 = tpu.assume_multiple %205, 8 : i32
    %207 = arith.index_cast %206 : i32 to index
    %c0_84 = arith.constant 0 : index
    %208 = vector.load %arg8[%207, %c0_84] : memref<64x384xf32, #tpu.memory_space<vmem>>, vector<8x384xf32>
    %c0_85 = arith.constant 0 : index
    %c0_86 = arith.constant 0 : index
    %209 = vector.load %arg7[%c0_85, %c0_86] : memref<8x128xf32, #tpu.memory_space<vmem>>, vector<8x128xf32>
    %c0_87 = arith.constant 0 : index
    %c0_88 = arith.constant 0 : index
    %210 = vector.load %arg4[%c0_87, %c0_88] : memref<128x384xf32, #tpu.memory_space<vmem>>, vector<128x384xf32>
    %cst_89 = arith.constant dense<0.000000e+00> : vector<8x384xf32>
    %211 = tpu.matmul %209, %210, %cst_89 {dimension_numbers = #tpu.dot_dimension_numbers<[1], [0], [0], [1], [0, 0, 1, 1], [], []>} : vector<8x128xf32>, vector<128x384xf32>, vector<8x384xf32> -> vector<8x384xf32>
    %c0_90 = arith.constant 0 : index
    %c0_91 = arith.constant 0 : index
    %212 = vector.load %arg5[%c0_90, %c0_91] : memref<1x384xf32, #tpu.memory_space<vmem>>, vector<1x384xf32>
    %213 = vector.broadcast %212 : vector<1x384xf32> to vector<8x384xf32>
    %214 = arith.addf %211, %213 : vector<8x384xf32>
    %215 = vector.extract_strided_slice %208 {offsets = [0, 0], sizes = [8, 128], strides = [1, 1]} : vector<8x384xf32> to vector<8x128xf32>
    %216 = vector.extract_strided_slice %208 {offsets = [0, 128], sizes = [8, 128], strides = [1, 1]} : vector<8x384xf32> to vector<8x128xf32>
    %217 = vector.extract_strided_slice %208 {offsets = [0, 256], sizes = [8, 128], strides = [1, 1]} : vector<8x384xf32> to vector<8x128xf32>
    %218 = vector.extract_strided_slice %214 {offsets = [0, 0], sizes = [8, 128], strides = [1, 1]} : vector<8x384xf32> to vector<8x128xf32>
    %219 = vector.extract_strided_slice %214 {offsets = [0, 128], sizes = [8, 128], strides = [1, 1]} : vector<8x384xf32> to vector<8x128xf32>
    %220 = vector.extract_strided_slice %214 {offsets = [0, 256], sizes = [8, 128], strides = [1, 1]} : vector<8x384xf32> to vector<8x128xf32>
    %221 = arith.addf %215, %218 : vector<8x128xf32>
    %222 = arith.negf %221 : vector<8x128xf32>
    %223 = math.exp %222 : vector<8x128xf32>
    %cst_92 = arith.constant 1.000000e+00 : f32
    %224 = vector.broadcast %cst_92 : f32 to vector<8x128xf32>
    %225 = arith.addf %224, %223 : vector<8x128xf32>
    %226 = arith.divf %224, %225 : vector<8x128xf32>
    %227 = arith.addf %216, %219 : vector<8x128xf32>
    %228 = arith.negf %227 : vector<8x128xf32>
    %229 = math.exp %228 : vector<8x128xf32>
    %cst_93 = arith.constant 1.000000e+00 : f32
    %230 = vector.broadcast %cst_93 : f32 to vector<8x128xf32>
    %231 = arith.addf %230, %229 : vector<8x128xf32>
    %232 = arith.divf %230, %231 : vector<8x128xf32>
    %233 = arith.mulf %226, %220 : vector<8x128xf32>
    %234 = arith.addf %217, %233 : vector<8x128xf32>
    %235 = math.tanh %234 : vector<8x128xf32>
    %cst_94 = arith.constant 1.000000e+00 : f32
    %236 = vector.broadcast %cst_94 : f32 to vector<8x128xf32>
    %237 = arith.subf %236, %232 : vector<8x128xf32>
    %238 = arith.mulf %237, %235 : vector<8x128xf32>
    %239 = arith.mulf %232, %209 : vector<8x128xf32>
    %240 = arith.addf %238, %239 : vector<8x128xf32>
    %c0_95 = arith.constant 0 : index
    %c0_96 = arith.constant 0 : index
    %241 = vector.load %arg7[%c0_95, %c0_96] : memref<8x128xf32, #tpu.memory_space<vmem>>, vector<8x128xf32>
    tpu.vector_store %arg7[%c0_95, %c0_96], %240 {strides = array<i32>} : memref<8x128xf32, #tpu.memory_space<vmem>>, vector<8x128xf32>,
    %242 = arith.index_cast %206 : i32 to index
    %c0_97 = arith.constant 0 : index
    %243 = vector.load %arg6[%242, %c0_97] : memref<64x128xf32, #tpu.memory_space<vmem>>, vector<8x128xf32>
    tpu.vector_store %arg6[%242, %c0_97], %240 {strides = array<i32>} : memref<64x128xf32, #tpu.memory_space<vmem>>, vector<8x128xf32>,
    %c6_i32 = arith.constant 6 : i32
    %c8_i32_98 = arith.constant 8 : i32
    %244 = arith.muli %c6_i32, %c8_i32_98 : i32
    %245 = tpu.assume_multiple %244, 8 : i32
    %246 = arith.index_cast %245 : i32 to index
    %c0_99 = arith.constant 0 : index
    %247 = vector.load %arg8[%246, %c0_99] : memref<64x384xf32, #tpu.memory_space<vmem>>, vector<8x384xf32>
    %c0_100 = arith.constant 0 : index
    %c0_101 = arith.constant 0 : index
    %248 = vector.load %arg7[%c0_100, %c0_101] : memref<8x128xf32, #tpu.memory_space<vmem>>, vector<8x128xf32>
    %c0_102 = arith.constant 0 : index
    %c0_103 = arith.constant 0 : index
    %249 = vector.load %arg4[%c0_102, %c0_103] : memref<128x384xf32, #tpu.memory_space<vmem>>, vector<128x384xf32>
    %cst_104 = arith.constant dense<0.000000e+00> : vector<8x384xf32>
    %250 = tpu.matmul %248, %249, %cst_104 {dimension_numbers = #tpu.dot_dimension_numbers<[1], [0], [0], [1], [0, 0, 1, 1], [], []>} : vector<8x128xf32>, vector<128x384xf32>, vector<8x384xf32> -> vector<8x384xf32>
    %c0_105 = arith.constant 0 : index
    %c0_106 = arith.constant 0 : index
    %251 = vector.load %arg5[%c0_105, %c0_106] : memref<1x384xf32, #tpu.memory_space<vmem>>, vector<1x384xf32>
    %252 = vector.broadcast %251 : vector<1x384xf32> to vector<8x384xf32>
    %253 = arith.addf %250, %252 : vector<8x384xf32>
    %254 = vector.extract_strided_slice %247 {offsets = [0, 0], sizes = [8, 128], strides = [1, 1]} : vector<8x384xf32> to vector<8x128xf32>
    %255 = vector.extract_strided_slice %247 {offsets = [0, 128], sizes = [8, 128], strides = [1, 1]} : vector<8x384xf32> to vector<8x128xf32>
    %256 = vector.extract_strided_slice %247 {offsets = [0, 256], sizes = [8, 128], strides = [1, 1]} : vector<8x384xf32> to vector<8x128xf32>
    %257 = vector.extract_strided_slice %253 {offsets = [0, 0], sizes = [8, 128], strides = [1, 1]} : vector<8x384xf32> to vector<8x128xf32>
    %258 = vector.extract_strided_slice %253 {offsets = [0, 128], sizes = [8, 128], strides = [1, 1]} : vector<8x384xf32> to vector<8x128xf32>
    %259 = vector.extract_strided_slice %253 {offsets = [0, 256], sizes = [8, 128], strides = [1, 1]} : vector<8x384xf32> to vector<8x128xf32>
    %260 = arith.addf %254, %257 : vector<8x128xf32>
    %261 = arith.negf %260 : vector<8x128xf32>
    %262 = math.exp %261 : vector<8x128xf32>
    %cst_107 = arith.constant 1.000000e+00 : f32
    %263 = vector.broadcast %cst_107 : f32 to vector<8x128xf32>
    %264 = arith.addf %263, %262 : vector<8x128xf32>
    %265 = arith.divf %263, %264 : vector<8x128xf32>
    %266 = arith.addf %255, %258 : vector<8x128xf32>
    %267 = arith.negf %266 : vector<8x128xf32>
    %268 = math.exp %267 : vector<8x128xf32>
    %cst_108 = arith.constant 1.000000e+00 : f32
    %269 = vector.broadcast %cst_108 : f32 to vector<8x128xf32>
    %270 = arith.addf %269, %268 : vector<8x128xf32>
    %271 = arith.divf %269, %270 : vector<8x128xf32>
    %272 = arith.mulf %265, %259 : vector<8x128xf32>
    %273 = arith.addf %256, %272 : vector<8x128xf32>
    %274 = math.tanh %273 : vector<8x128xf32>
    %cst_109 = arith.constant 1.000000e+00 : f32
    %275 = vector.broadcast %cst_109 : f32 to vector<8x128xf32>
    %276 = arith.subf %275, %271 : vector<8x128xf32>
    %277 = arith.mulf %276, %274 : vector<8x128xf32>
    %278 = arith.mulf %271, %248 : vector<8x128xf32>
    %279 = arith.addf %277, %278 : vector<8x128xf32>
    %c0_110 = arith.constant 0 : index
    %c0_111 = arith.constant 0 : index
    %280 = vector.load %arg7[%c0_110, %c0_111] : memref<8x128xf32, #tpu.memory_space<vmem>>, vector<8x128xf32>
    tpu.vector_store %arg7[%c0_110, %c0_111], %279 {strides = array<i32>} : memref<8x128xf32, #tpu.memory_space<vmem>>, vector<8x128xf32>,
    %281 = arith.index_cast %245 : i32 to index
    %c0_112 = arith.constant 0 : index
    %282 = vector.load %arg6[%281, %c0_112] : memref<64x128xf32, #tpu.memory_space<vmem>>, vector<8x128xf32>
    tpu.vector_store %arg6[%281, %c0_112], %279 {strides = array<i32>} : memref<64x128xf32, #tpu.memory_space<vmem>>, vector<8x128xf32>,
    %c7_i32 = arith.constant 7 : i32
    %c8_i32_113 = arith.constant 8 : i32
    %283 = arith.muli %c7_i32, %c8_i32_113 : i32
    %284 = tpu.assume_multiple %283, 8 : i32
    %285 = arith.index_cast %284 : i32 to index
    %c0_114 = arith.constant 0 : index
    %286 = vector.load %arg8[%285, %c0_114] : memref<64x384xf32, #tpu.memory_space<vmem>>, vector<8x384xf32>
    %c0_115 = arith.constant 0 : index
    %c0_116 = arith.constant 0 : index
    %287 = vector.load %arg7[%c0_115, %c0_116] : memref<8x128xf32, #tpu.memory_space<vmem>>, vector<8x128xf32>
    %c0_117 = arith.constant 0 : index
    %c0_118 = arith.constant 0 : index
    %288 = vector.load %arg4[%c0_117, %c0_118] : memref<128x384xf32, #tpu.memory_space<vmem>>, vector<128x384xf32>
    %cst_119 = arith.constant dense<0.000000e+00> : vector<8x384xf32>
    %289 = tpu.matmul %287, %288, %cst_119 {dimension_numbers = #tpu.dot_dimension_numbers<[1], [0], [0], [1], [0, 0, 1, 1], [], []>} : vector<8x128xf32>, vector<128x384xf32>, vector<8x384xf32> -> vector<8x384xf32>
    %c0_120 = arith.constant 0 : index
    %c0_121 = arith.constant 0 : index
    %290 = vector.load %arg5[%c0_120, %c0_121] : memref<1x384xf32, #tpu.memory_space<vmem>>, vector<1x384xf32>
    %291 = vector.broadcast %290 : vector<1x384xf32> to vector<8x384xf32>
    %292 = arith.addf %289, %291 : vector<8x384xf32>
    %293 = vector.extract_strided_slice %286 {offsets = [0, 0], sizes = [8, 128], strides = [1, 1]} : vector<8x384xf32> to vector<8x128xf32>
    %294 = vector.extract_strided_slice %286 {offsets = [0, 128], sizes = [8, 128], strides = [1, 1]} : vector<8x384xf32> to vector<8x128xf32>
    %295 = vector.extract_strided_slice %286 {offsets = [0, 256], sizes = [8, 128], strides = [1, 1]} : vector<8x384xf32> to vector<8x128xf32>
    %296 = vector.extract_strided_slice %292 {offsets = [0, 0], sizes = [8, 128], strides = [1, 1]} : vector<8x384xf32> to vector<8x128xf32>
    %297 = vector.extract_strided_slice %292 {offsets = [0, 128], sizes = [8, 128], strides = [1, 1]} : vector<8x384xf32> to vector<8x128xf32>
    %298 = vector.extract_strided_slice %292 {offsets = [0, 256], sizes = [8, 128], strides = [1, 1]} : vector<8x384xf32> to vector<8x128xf32>
    %299 = arith.addf %293, %296 : vector<8x128xf32>
    %300 = arith.negf %299 : vector<8x128xf32>
    %301 = math.exp %300 : vector<8x128xf32>
    %cst_122 = arith.constant 1.000000e+00 : f32
    %302 = vector.broadcast %cst_122 : f32 to vector<8x128xf32>
    %303 = arith.addf %302, %301 : vector<8x128xf32>
    %304 = arith.divf %302, %303 : vector<8x128xf32>
    %305 = arith.addf %294, %297 : vector<8x128xf32>
    %306 = arith.negf %305 : vector<8x128xf32>
    %307 = math.exp %306 : vector<8x128xf32>
    %cst_123 = arith.constant 1.000000e+00 : f32
    %308 = vector.broadcast %cst_123 : f32 to vector<8x128xf32>
    %309 = arith.addf %308, %307 : vector<8x128xf32>
    %310 = arith.divf %308, %309 : vector<8x128xf32>
    %311 = arith.mulf %304, %298 : vector<8x128xf32>
    %312 = arith.addf %295, %311 : vector<8x128xf32>
    %313 = math.tanh %312 : vector<8x128xf32>
    %cst_124 = arith.constant 1.000000e+00 : f32
    %314 = vector.broadcast %cst_124 : f32 to vector<8x128xf32>
    %315 = arith.subf %314, %310 : vector<8x128xf32>
    %316 = arith.mulf %315, %313 : vector<8x128xf32>
    %317 = arith.mulf %310, %287 : vector<8x128xf32>
    %318 = arith.addf %316, %317 : vector<8x128xf32>
    %c0_125 = arith.constant 0 : index
    %c0_126 = arith.constant 0 : index
    %319 = vector.load %arg7[%c0_125, %c0_126] : memref<8x128xf32, #tpu.memory_space<vmem>>, vector<8x128xf32>
    tpu.vector_store %arg7[%c0_125, %c0_126], %318 {strides = array<i32>} : memref<8x128xf32, #tpu.memory_space<vmem>>, vector<8x128xf32>,
    %320 = arith.index_cast %284 : i32 to index
    %c0_127 = arith.constant 0 : index
    %321 = vector.load %arg6[%320, %c0_127] : memref<64x128xf32, #tpu.memory_space<vmem>>, vector<8x128xf32>
    tpu.vector_store %arg6[%320, %c0_127], %318 {strides = array<i32>} : memref<64x128xf32, #tpu.memory_space<vmem>>, vector<8x128xf32>,
    %c8_i32_128 = arith.constant 8 : i32
    return
  }
  func.func @transform_0(%arg0: i32) -> (i32, i32) {
    %c0_i32 = arith.constant 0 : i32
    %c0_i32_0 = arith.constant 0 : i32
    return %arg0, %c0_i32 : i32, i32
  }
  func.func @transform_1(%arg0: i32) -> (i32, i32) {
    %c0_i32 = arith.constant 0 : i32
    %c0_i32_0 = arith.constant 0 : i32
    %c0_i32_1 = arith.constant 0 : i32
    return %c0_i32, %c0_i32_0 : i32, i32
  }
  func.func @transform_2(%arg0: i32) -> (i32, i32) {
    %c0_i32 = arith.constant 0 : i32
    %c0_i32_0 = arith.constant 0 : i32
    %c0_i32_1 = arith.constant 0 : i32
    return %c0_i32, %c0_i32_0 : i32, i32
  }
  func.func @transform_3(%arg0: i32) -> (i32, i32) {
    %c0_i32 = arith.constant 0 : i32
    %c0_i32_0 = arith.constant 0 : i32
    %c0_i32_1 = arith.constant 0 : i32
    return %c0_i32, %c0_i32_0 : i32, i32
  }
  func.func @transform_4(%arg0: i32) -> (i32, i32) {
    %c0_i32 = arith.constant 0 : i32
    %c0_i32_0 = arith.constant 0 : i32
    %c0_i32_1 = arith.constant 0 : i32
    return %c0_i32, %c0_i32_0 : i32, i32
  }
  func.func @transform_5(%arg0: i32) -> (i32, i32) {
    %c0_i32 = arith.constant 0 : i32
    %c0_i32_0 = arith.constant 0 : i32
    return %arg0, %c0_i32 : i32, i32
  }
}

</mosaic_0001>

<llo_original>
// kernel: tpu_custom_call.1
$region0: #{tpu_custom_call.1}
  #allocation0 [shape = 'u32[]', space=smem, size = 0x4, offset = 0x4, fixed_abs, tag = 'smem constant byte address 0x4 - core index']
  #allocation1 [shape = 'u32[72,128]{1,0:T(1,128)}', space=vmem, size = 0x9000, scoped, tag = 'internal scratch']
  #allocation2 [shape = 'f32[8,128]{1,0:T(8,128)}', space=vmem, size = 0x1000, scoped, tag = 'scratch operand']
  #allocation3 [shape = 'f32[64,384]{1,0:T(8,128)}', space=vmem, size = 0x18000, scoped, tag = 'scratch operand']
  %s0 = inlined_call_operand.hbm [shape: f32[64,128], index: 0, kind: input, shape index: {}]
  %s1 = inlined_call_operand.hbm [shape: f32[128,384], index: 1, kind: input, shape index: {}]
  %s2 = inlined_call_operand.hbm [shape: f32[1,384], index: 2, kind: input, shape index: {}]
  %s3 = inlined_call_operand.hbm [shape: f32[128,384], index: 3, kind: input, shape index: {}]
  %s4 = inlined_call_operand.vmem [shape: f32[1,384], index: 4, kind: input, shape index: {}]
  %s5 = inlined_call_operand.hbm [shape: f32[64,128], index: 5, kind: output, shape index: {}]
  %s6 = sld [smem:[#allocation0]]
  $region50: #{tpu_custom_call.1} parent=0
    _
  %s8 = ssub.s32 1, %s6
  %s9 = scalar_select 0, %s8, %s6
  $region1: #{tpu_custom_call.1} parent=0
    #allocation4 [shape = 'u8[32768]{0}', space=vmem, size = 0x8000, scoped, tag = 'input window, operand 0, single buffered']
    #allocation5 [shape = 's32[1]{0}', space=sflag, size = 0x4, scoped, tag = 'scoped memory for tpu_custom_call.1']
    #allocation6 [shape = 's32[1]{0}', space=sflag, size = 0x4, scoped, tag = 'scoped memory for tpu_custom_call.1']
    #allocation7 [shape = 'u8[196608]{0}', space=vmem, size = 0x30000, scoped, tag = 'input window, operand 1, single buffered']
    #allocation8 [shape = 's32[1]{0}', space=sflag, size = 0x4, scoped, tag = 'scoped memory for tpu_custom_call.1']
    #allocation9 [shape = 'u8[1536]{0}', space=vmem, size = 0x800, scoped, tag = 'input window, operand 2, single buffered']
    #allocation10 [shape = 'u8[196608]{0}', space=vmem, size = 0x30000, scoped, tag = 'input window, operand 3, single buffered']
    #allocation11 [shape = 's32[1]{0}', space=sflag, size = 0x4, scoped, tag = 'scoped memory for tpu_custom_call.1']
    #allocation12 [shape = 'u8[32768]{0}', space=vmem, size = 0x8000, scoped, tag = 'output window, operand 0, single buffered']
    %10 = vsyncpa [#allocation5], 0
    %11 = vsyncpa [#allocation8], 0
    %12 = vsyncpa [#allocation11], 0
    %13 = vsyncpa [#allocation6], 0
    // Predicated region
    $region2: #{tpu_custom_call.1} parent=1 // pred_check
      _
    $region3: #{tpu_custom_call.1} parent=1 // pred_check_branch
      %15 = sbr.rel (0) target = $region5
    $region4: #{tpu_custom_call.1} parent=1 // pred_region
      %17 = vsyncadd [#allocation5], 0
      %s18 = sshll.u32 %s0, 4
      %s19 = int_to_ptr.hbm [resolvable:$true] %s18
      %s20 = sshll.u32 [#allocation4], 4
      %s21 = int_to_ptr.vmem [resolvable:$true] %s20
      %26 = dma.hbm_to_vmem [thread:$0]  %s19, 1024, %s21, [#allocation5], 128, 128, 8
    $region5: #{tpu_custom_call.1} parent=1 // pred_fallthru
      _
    // Predicated region
    $region6: #{tpu_custom_call.1} parent=1 // pred_check
      _
    $region7: #{tpu_custom_call.1} parent=1 // pred_check_branch
      %28 = sbr.rel (0) target = $region9
    $region8: #{tpu_custom_call.1} parent=1 // pred_region
      %30 = vsyncadd [#allocation8], 0
      %s31 = sshll.u32 %s1, 4
      %s32 = int_to_ptr.hbm [resolvable:$true] %s31
      %s33 = sshll.u32 [#allocation7], 4
      %s34 = int_to_ptr.vmem [resolvable:$true] %s33
      %39 = dma.hbm_to_vmem [thread:$0]  %s32, 6144, %s34, [#allocation8], 384, 384, 24
    $region9: #{tpu_custom_call.1} parent=1 // pred_fallthru
      _
    // Predicated region
    $region10: #{tpu_custom_call.1} parent=1 // pred_check
      _
    $region11: #{tpu_custom_call.1} parent=1 // pred_check_branch
      %41 = sbr.rel (0) target = $region13
    $region12: #{tpu_custom_call.1} parent=1 // pred_region
      %43 = vsyncadd [#allocation8], 0
      %s45 = sshll.u32 %s2, 4
      %s46 = int_to_ptr.hbm [resolvable:$true] %s45
      %s47 = sshll.u32 [#allocation9], 4
      %s48 = int_to_ptr.vmem [resolvable:$true] %s47
      %50 = dma.hbm_to_vmem [thread:$0]  %s46, 48, %s48, [#allocation8]
    $region13: #{tpu_custom_call.1} parent=1 // pred_fallthru
      _
    // Predicated region
    $region14: #{tpu_custom_call.1} parent=1 // pred_check
      _
    $region15: #{tpu_custom_call.1} parent=1 // pred_check_branch
      %52 = sbr.rel (0) target = $region17
    $region16: #{tpu_custom_call.1} parent=1 // pred_region
      %54 = vsyncadd [#allocation11], 0
      %s55 = sshll.u32 %s3, 4
      %s56 = int_to_ptr.hbm [resolvable:$true] %s55
      %s57 = sshll.u32 [#allocation10], 4
      %s58 = int_to_ptr.vmem [resolvable:$true] %s57
      %63 = dma.hbm_to_vmem [thread:$0]  %s56, 6144, %s58, [#allocation11], 384, 384, 24
    $region17: #{tpu_custom_call.1} parent=1 // pred_fallthru
      _
    // Predicated region
    $region18: #{tpu_custom_call.1} parent=1 // pred_check
      _
    $region19: #{tpu_custom_call.1} parent=1 // pred_check_branch
      %65 = sbr.rel (0) target = $region21
    $region20: #{tpu_custom_call.1} parent=1 // pred_region
      _
    $region21: #{tpu_custom_call.1} parent=1 // pred_fallthru
      _
    // Predicated region
    $region22: #{tpu_custom_call.1} parent=1 // pred_check
      _
    $region23: #{tpu_custom_call.1} parent=1 // pred_check_branch
      %67 = sbr.rel (0) target = $region25
    $region24: #{tpu_custom_call.1} parent=1 // pred_region
      %69 = dma.done [#allocation5], 1024
    $region25: #{tpu_custom_call.1} parent=1 // pred_fallthru
      _
    // Predicated region
    $region26: #{tpu_custom_call.1} parent=1 // pred_check
      _
    $region27: #{tpu_custom_call.1} parent=1 // pred_check_branch
      %71 = sbr.rel (0) target = $region29
    $region28: #{tpu_custom_call.1} parent=1 // pred_region
      %73 = dma.done [#allocation8], 6144
    $region29: #{tpu_custom_call.1} parent=1 // pred_fallthru
      _
    // Predicated region
    $region30: #{tpu_custom_call.1} parent=1 // pred_check
      _
    $region31: #{tpu_custom_call.1} parent=1 // pred_check_branch
      %75 = sbr.rel (0) target = $region33
    $region32: #{tpu_custom_call.1} parent=1 // pred_region
      %77 = dma.done [#allocation8], 48
    $region33: #{tpu_custom_call.1} parent=1 // pred_fallthru
      _
    // Predicated region
    $region34: #{tpu_custom_call.1} parent=1 // pred_check
      _
    $region35: #{tpu_custom_call.1} parent=1 // pred_check_branch
      %79 = sbr.rel (0) target = $region37
    $region36: #{tpu_custom_call.1} parent=1 // pred_region
      %81 = dma.done [#allocation11], 6144
    $region37: #{tpu_custom_call.1} parent=1 // pred_fallthru
      _
    %p82 = scmp.eq.s32.totalorder 0, 0
    // Predicated region
    $region38: #{tpu_custom_call.1} parent=1 // pred_check
      %p83 = pneg %p82
    $region39: #{tpu_custom_call.1} parent=1 // pred_check_branch
      %85 = sbr.rel (%p83) target = $region41
    $region40: #{tpu_custom_call.1} parent=1 // pred_region
      %86 = vst [vmem:[#allocation2] sm:$0xff] 0.0
    $region41: #{tpu_custom_call.1} parent=1 // pred_fallthru
      _
    %v87 = vld [vmem:[#allocation4] sm:$0xff]
    %v88 = vld [vmem:[#allocation4 + $0x8] sm:$0xff]
    %v89 = vld [vmem:[#allocation4 + $0x10] sm:$0xff]
    %v90 = vld [vmem:[#allocation4 + $0x18] sm:$0xff]
    %v91 = vld [vmem:[#allocation4 + $0x20] sm:$0xff]
    %v92 = vld [vmem:[#allocation4 + $0x28] sm:$0xff]
    %v93 = vld [vmem:[#allocation4 + $0x30] sm:$0xff]
    %v94 = vld [vmem:[#allocation4 + $0x38] sm:$0xff]
    %v95 = vld [vmem:[#allocation7] sm:$0xff]
    %v96 = vld [vmem:[#allocation7 + $0x8] sm:$0xff]
    %v97 = vld [vmem:[#allocation7 + $0x10] sm:$0xff]
    %v98 = vld [vmem:[#allocation7 + $0x18] sm:$0xff]
    %v99 = vld [vmem:[#allocation7 + $0x20] sm:$0xff]
    %v100 = vld [vmem:[#allocation7 + $0x28] sm:$0xff]
    %v101 = vld [vmem:[#allocation7 + $0x30] sm:$0xff]
    %v102 = vld [vmem:[#allocation7 + $0x38] sm:$0xff]
    %v103 = vld [vmem:[#allocation7 + $0x40] sm:$0xff]
    %v104 = vld [vmem:[#allocation7 + $0x48] sm:$0xff]
    %v105 = vld [vmem:[#allocation7 + $0x50] sm:$0xff]
    %v106 = vld [vmem:[#allocation7 + $0x58] sm:$0xff]
    %v107 = vld [vmem:[#allocation7 + $0x60] sm:$0xff]
    %v108 = vld [vmem:[#allocation7 + $0x68] sm:$0xff]
    %v109 = vld [vmem:[#allocation7 + $0x70] sm:$0xff]
    %v110 = vld [vmem:[#allocation7 + $0x78] sm:$0xff]
    %v111 = vld [vmem:[#allocation7 + $0x80] sm:$0xff]
    %v112 = vld [vmem:[#allocation7 + $0x88] sm:$0xff]
    %v113 = vld [vmem:[#allocation7 + $0x90] sm:$0xff]
    %v114 = vld [vmem:[#allocation7 + $0x98] sm:$0xff]
    %v115 = vld [vmem:[#allocation7 + $0xa0] sm:$0xff]
    %v116 = vld [vmem:[#allocation7 + $0xa8] sm:$0xff]
    %v117 = vld [vmem:[#allocation7 + $0xb0] sm:$0xff]
    %v118 = vld [vmem:[#allocation7 + $0xb8] sm:$0xff]
    %v119 = vld [vmem:[#allocation7 + $0xc0] sm:$0xff]
    %v120 = vld [vmem:[#allocation7 + $0xc8] sm:$0xff]
    %v121 = vld [vmem:[#allocation7 + $0xd0] sm:$0xff]
    %v122 = vld [vmem:[#allocation7 + $0xd8] sm:$0xff]
    %v123 = vld [vmem:[#allocation7 + $0xe0] sm:$0xff]
    %v124 = vld [vmem:[#allocation7 + $0xe8] sm:$0xff]
    %v125 = vld [vmem:[#allocation7 + $0xf0] sm:$0xff]
    %v126 = vld [vmem:[#allocation7 + $0xf8] sm:$0xff]
    %v127 = vld [vmem:[#allocation7 + $0x100] sm:$0xff]
    %v128 = vld [vmem:[#allocation7 + $0x108] sm:$0xff]
    %v129 = vld [vmem:[#allocation7 + $0x110] sm:$0xff]
    %v130 = vld [vmem:[#allocation7 + $0x118] sm:$0xff]
    %v131 = vld [vmem:[#allocation7 + $0x120] sm:$0xff]
    %v132 = vld [vmem:[#allocation7 + $0x128] sm:$0xff]
    %v133 = vld [vmem:[#allocation7 + $0x130] sm:$0xff]
    %v134 = vld [vmem:[#allocation7 + $0x138] sm:$0xff]
    %v135 = vld [vmem:[#allocation7 + $0x140] sm:$0xff]
    %v136 = vld [vmem:[#allocation7 + $0x148] sm:$0xff]
    %v137 = vld [vmem:[#allocation7 + $0x150] sm:$0xff]
    %v138 = vld [vmem:[#allocation7 + $0x158] sm:$0xff]
    %v139 = vld [vmem:[#allocation7 + $0x160] sm:$0xff]
    %v140 = vld [vmem:[#allocation7 + $0x168] sm:$0xff]
    %v141 = vld [vmem:[#allocation7 + $0x170] sm:$0xff]
    %v142 = vld [vmem:[#allocation7 + $0x178] sm:$0xff]
    %v143 = vld [vmem:[#allocation9] sm:$0x7]
    %v145 = vperm.slane %v143, 0
    %v146 = vperm.slane %v143, 1
    %v147 = vperm.slane %v143, 2
    %151 = vmatpush.msra.mxu0 %v140
    %152 = vmatpush.msra.mxu0 %v137
    %153 = vmatpush.msra.mxu0 %v134
    %154 = vmatpush.msra.mxu0 %v131
    %155 = vmatpush.msra.mxu0 %v128
    %156 = vmatpush.msra.mxu0 %v125
    %157 = vmatpush.msra.mxu0 %v122
    %158 = vmatpush.msra.mxu0 %v119
    %159 = vmatpush.msra.mxu0 %v116
    %160 = vmatpush.msra.mxu0 %v113
    %161 = vmatpush.msra.mxu0 %v110
    %162 = vmatpush.msra.mxu0 %v107
    %163 = vmatpush.msra.mxu0 %v104
    %164 = vmatpush.msra.mxu0 %v101
    %165 = vmatpush.msra.mxu0 %v98
    %166 = vmatpush.msra.mxu0 %v95
    %167 = vmatmul.f32.gmra.mxu0 %v87
    %v168 = vpop.f32.mrf.mxu0
    %v169 = vadd.f32 %v145, %v168
    %170 = vmatmul.f32.gmra.mxu0 %v88
    %v171 = vpop.f32.mrf.mxu0
    %v172 = vadd.f32 %v145, %v171
    %173 = vmatmul.f32.gmra.mxu0 %v89
    %v174 = vpop.f32.mrf.mxu0
    %v175 = vadd.f32 %v145, %v174
    %176 = vmatmul.f32.gmra.mxu0 %v90
    %v177 = vpop.f32.mrf.mxu0
    %v178 = vadd.f32 %v145, %v177
    %179 = vmatmul.f32.gmra.mxu0 %v91
    %v180 = vpop.f32.mrf.mxu0
    %v181 = vadd.f32 %v145, %v180
    %182 = vmatmul.f32.gmra.mxu0 %v92
    %v183 = vpop.f32.mrf.mxu0
    %v184 = vadd.f32 %v145, %v183
    %185 = vmatmul.f32.gmra.mxu0 %v93
    %v186 = vpop.f32.mrf.mxu0
    %v187 = vadd.f32 %v145, %v186
    %188 = vmatmul.f32.gmra.mxu0 %v94
    %v189 = vpop.f32.mrf.mxu0
    %v190 = vadd.f32 %v145, %v189
    %191 = vdwg.mxu0
    %192 = vmatpush.msra.mxu0 %v141
    %193 = vmatpush.msra.mxu0 %v138
    %194 = vmatpush.msra.mxu0 %v135
    %195 = vmatpush.msra.mxu0 %v132
    %196 = vmatpush.msra.mxu0 %v129
    %197 = vmatpush.msra.mxu0 %v126
    %198 = vmatpush.msra.mxu0 %v123
    %199 = vmatpush.msra.mxu0 %v120
    %200 = vmatpush.msra.mxu0 %v117
    %201 = vmatpush.msra.mxu0 %v114
    %202 = vmatpush.msra.mxu0 %v111
    %203 = vmatpush.msra.mxu0 %v108
    %204 = vmatpush.msra.mxu0 %v105
    %205 = vmatpush.msra.mxu0 %v102
    %206 = vmatpush.msra.mxu0 %v99
    %207 = vmatpush.msra.mxu0 %v96
    %208 = vmatmul.f32.gmra.mxu0 %v87
    %v209 = vpop.f32.mrf.mxu0
    %v210 = vadd.f32 %v146, %v209
    %211 = vmatmul.f32.gmra.mxu0 %v88
    %v212 = vpop.f32.mrf.mxu0
    %v213 = vadd.f32 %v146, %v212
    %214 = vmatmul.f32.gmra.mxu0 %v89
    %v215 = vpop.f32.mrf.mxu0
    %v216 = vadd.f32 %v146, %v215
    %217 = vmatmul.f32.gmra.mxu0 %v90
    %v218 = vpop.f32.mrf.mxu0
    %v219 = vadd.f32 %v146, %v218
    %220 = vmatmul.f32.gmra.mxu0 %v91
    %v221 = vpop.f32.mrf.mxu0
    %v222 = vadd.f32 %v146, %v221
    %223 = vmatmul.f32.gmra.mxu0 %v92
    %v224 = vpop.f32.mrf.mxu0
    %v225 = vadd.f32 %v146, %v224
    %226 = vmatmul.f32.gmra.mxu0 %v93
    %v227 = vpop.f32.mrf.mxu0
    %v228 = vadd.f32 %v146, %v227
    %229 = vmatmul.f32.gmra.mxu0 %v94
    %v230 = vpop.f32.mrf.mxu0
    %v231 = vadd.f32 %v146, %v230
    %232 = vdwg.mxu0
    %233 = vmatpush.msra.mxu0 %v142
    %234 = vmatpush.msra.mxu0 %v139
    %235 = vmatpush.msra.mxu0 %v136
    %236 = vmatpush.msra.mxu0 %v133
    %237 = vmatpush.msra.mxu0 %v130
    %238 = vmatpush.msra.mxu0 %v127
    %239 = vmatpush.msra.mxu0 %v124
    %240 = vmatpush.msra.mxu0 %v121
    %241 = vmatpush.msra.mxu0 %v118
    %242 = vmatpush.msra.mxu0 %v115
    %243 = vmatpush.msra.mxu0 %v112
    %244 = vmatpush.msra.mxu0 %v109
    %245 = vmatpush.msra.mxu0 %v106
    %246 = vmatpush.msra.mxu0 %v103
    %247 = vmatpush.msra.mxu0 %v100
    %248 = vmatpush.msra.mxu0 %v97
    %249 = vmatmul.f32.gmra.mxu0 %v87
    %v250 = vpop.f32.mrf.mxu0
    %v251 = vadd.f32 %v147, %v250
    %252 = vmatmul.f32.gmra.mxu0 %v88
    %v253 = vpop.f32.mrf.mxu0
    %v254 = vadd.f32 %v147, %v253
    %255 = vmatmul.f32.gmra.mxu0 %v89
    %v256 = vpop.f32.mrf.mxu0
    %v257 = vadd.f32 %v147, %v256
    %258 = vmatmul.f32.gmra.mxu0 %v90
    %v259 = vpop.f32.mrf.mxu0
    %v260 = vadd.f32 %v147, %v259
    %261 = vmatmul.f32.gmra.mxu0 %v91
    %v262 = vpop.f32.mrf.mxu0
    %v263 = vadd.f32 %v147, %v262
    %264 = vmatmul.f32.gmra.mxu0 %v92
    %v265 = vpop.f32.mrf.mxu0
    %v266 = vadd.f32 %v147, %v265
    %267 = vmatmul.f32.gmra.mxu0 %v93
    %v268 = vpop.f32.mrf.mxu0
    %v269 = vadd.f32 %v147, %v268
    %270 = vmatmul.f32.gmra.mxu0 %v94
    %v271 = vpop.f32.mrf.mxu0
    %v272 = vadd.f32 %v147, %v271
    %273 = vdwg.mxu0
    %274 = vst [vmem:[#allocation3] sm:$0xff] %v169
    %275 = vst [vmem:[#allocation3 + $0x8] sm:$0xff] %v210
    %276 = vst [vmem:[#allocation3 + $0x10] sm:$0xff] %v251
    %277 = vst [vmem:[#allocation3 + $0x18] sm:$0xff] %v172
    %278 = vst [vmem:[#allocation3 + $0x20] sm:$0xff] %v213
    %279 = vst [vmem:[#allocation3 + $0x28] sm:$0xff] %v254
    %280 = vst [vmem:[#allocation3 + $0x30] sm:$0xff] %v175
    %281 = vst [vmem:[#allocation3 + $0x38] sm:$0xff] %v216
    %282 = vst [vmem:[#allocation3 + $0x40] sm:$0xff] %v257
    %283 = vst [vmem:[#allocation3 + $0x48] sm:$0xff] %v178
    %284 = vst [vmem:[#allocation3 + $0x50] sm:$0xff] %v219
    %285 = vst [vmem:[#allocation3 + $0x58] sm:$0xff] %v260
    %286 = vst [vmem:[#allocation3 + $0x60] sm:$0xff] %v181
    %287 = vst [vmem:[#allocation3 + $0x68] sm:$0xff] %v222
    %288 = vst [vmem:[#allocation3 + $0x70] sm:$0xff] %v263
    %289 = vst [vmem:[#allocation3 + $0x78] sm:$0xff] %v184
    %290 = vst [vmem:[#allocation3 + $0x80] sm:$0xff] %v225
    %291 = vst [vmem:[#allocation3 + $0x88] sm:$0xff] %v266
    %292 = vst [vmem:[#allocation3 + $0x90] sm:$0xff] %v187
    %293 = vst [vmem:[#allocation3 + $0x98] sm:$0xff] %v228
    %294 = vst [vmem:[#allocation3 + $0xa0] sm:$0xff] %v269
    %295 = vst [vmem:[#allocation3 + $0xa8] sm:$0xff] %v190
    %296 = vst [vmem:[#allocation3 + $0xb0] sm:$0xff] %v231
    %297 = vst [vmem:[#allocation3 + $0xb8] sm:$0xff] %v272
    %s298 = smul.u32 0, 3
    %s299 = smul.addr %s298, 8
    %s300 = scalar_lea.vmem [#allocation3], %s299
    %v301 = vld [vmem:[%s300] sm:$0xff]
    %v302 = vld [vmem:[%s300 + $0x8] sm:$0xff]
    %v303 = vld [vmem:[%s300 + $0x10] sm:$0xff]
    %v304 = vld [vmem:[#allocation2] sm:$0xff]
    %v305 = vld [vmem:[#allocation10] sm:$0xff]
    %v306 = vld [vmem:[#allocation10 + $0x8] sm:$0xff]
    %v307 = vld [vmem:[#allocation10 + $0x10] sm:$0xff]
    %v308 = vld [vmem:[#allocation10 + $0x18] sm:$0xff]
    %v309 = vld [vmem:[#allocation10 + $0x20] sm:$0xff]
    %v310 = vld [vmem:[#allocation10 + $0x28] sm:$0xff]
    %v311 = vld [vmem:[#allocation10 + $0x30] sm:$0xff]
    %v312 = vld [vmem:[#allocation10 + $0x38] sm:$0xff]
    %v313 = vld [vmem:[#allocation10 + $0x40] sm:$0xff]
    %v314 = vld [vmem:[#allocation10 + $0x48] sm:$0xff]
    %v315 = vld [vmem:[#allocation10 + $0x50] sm:$0xff]
    %v316 = vld [vmem:[#allocation10 + $0x58] sm:$0xff]
    %v317 = vld [vmem:[#allocation10 + $0x60] sm:$0xff]
    %v318 = vld [vmem:[#allocation10 + $0x68] sm:$0xff]
    %v319 = vld [vmem:[#allocation10 + $0x70] sm:$0xff]
    %v320 = vld [vmem:[#allocation10 + $0x78] sm:$0xff]
    %v321 = vld [vmem:[#allocation10 + $0x80] sm:$0xff]
    %v322 = vld [vmem:[#allocation10 + $0x88] sm:$0xff]
    %v323 = vld [vmem:[#allocation10 + $0x90] sm:$0xff]
    %v324 = vld [vmem:[#allocation10 + $0x98] sm:$0xff]
    %v325 = vld [vmem:[#allocation10 + $0xa0] sm:$0xff]
    %v326 = vld [vmem:[#allocation10 + $0xa8] sm:$0xff]
    %v327 = vld [vmem:[#allocation10 + $0xb0] sm:$0xff]
    %v328 = vld [vmem:[#allocation10 + $0xb8] sm:$0xff]
    %v329 = vld [vmem:[#allocation10 + $0xc0] sm:$0xff]
    %v330 = vld [vmem:[#allocation10 + $0xc8] sm:$0xff]
    %v331 = vld [vmem:[#allocation10 + $0xd0] sm:$0xff]
    %v332 = vld [vmem:[#allocation10 + $0xd8] sm:$0xff]
    %v333 = vld [vmem:[#allocation10 + $0xe0] sm:$0xff]
    %v334 = vld [vmem:[#allocation10 + $0xe8] sm:$0xff]
    %v335 = vld [vmem:[#allocation10 + $0xf0] sm:$0xff]
    %v336 = vld [vmem:[#allocation10 + $0xf8] sm:$0xff]
    %v337 = vld [vmem:[#allocation10 + $0x100] sm:$0xff]
    %v338 = vld [vmem:[#allocation10 + $0x108] sm:$0xff]
    %v339 = vld [vmem:[#allocation10 + $0x110] sm:$0xff]
    %v340 = vld [vmem:[#allocation10 + $0x118] sm:$0xff]
    %v341 = vld [vmem:[#allocation10 + $0x120] sm:$0xff]
    %v342 = vld [vmem:[#allocation10 + $0x128] sm:$0xff]
    %v343 = vld [vmem:[#allocation10 + $0x130] sm:$0xff]
    %v344 = vld [vmem:[#allocation10 + $0x138] sm:$0xff]
    %v345 = vld [vmem:[#allocation10 + $0x140] sm:$0xff]
    %v346 = vld [vmem:[#allocation10 + $0x148] sm:$0xff]
    %v347 = vld [vmem:[#allocation10 + $0x150] sm:$0xff]
    %v348 = vld [vmem:[#allocation10 + $0x158] sm:$0xff]
    %v349 = vld [vmem:[#allocation10 + $0x160] sm:$0xff]
    %v350 = vld [vmem:[#allocation10 + $0x168] sm:$0xff]
    %v351 = vld [vmem:[#allocation10 + $0x170] sm:$0xff]
    %v352 = vld [vmem:[#allocation10 + $0x178] sm:$0xff]
    %v353 = vld [vmem:[%s4] sm:$0x7]
    %v355 = vperm.slane %v353, 0
    %v356 = vperm.slane %v353, 1
    %v357 = vperm.slane %v353, 2
    %361 = vmatpush.msra.mxu0 %v350
    %362 = vmatpush.msra.mxu0 %v347
    %363 = vmatpush.msra.mxu0 %v344
    %364 = vmatpush.msra.mxu0 %v341
    %365 = vmatpush.msra.mxu0 %v338
    %366 = vmatpush.msra.mxu0 %v335
    %367 = vmatpush.msra.mxu0 %v332
    %368 = vmatpush.msra.mxu0 %v329
    %369 = vmatpush.msra.mxu0 %v326
    %370 = vmatpush.msra.mxu0 %v323
    %371 = vmatpush.msra.mxu0 %v320
    %372 = vmatpush.msra.mxu0 %v317
    %373 = vmatpush.msra.mxu0 %v314
    %374 = vmatpush.msra.mxu0 %v311
    %375 = vmatpush.msra.mxu0 %v308
    %376 = vmatpush.msra.mxu0 %v305
    %377 = vmatmul.f32.gmra.mxu0 %v304
    %v378 = vpop.f32.mrf.mxu0
    %v379 = vadd.f32 %v355, %v378
    %380 = vdwg.mxu0
    %381 = vmatpush.msra.mxu0 %v351
    %382 = vmatpush.msra.mxu0 %v348
    %383 = vmatpush.msra.mxu0 %v345
    %384 = vmatpush.msra.mxu0 %v342
    %385 = vmatpush.msra.mxu0 %v339
    %386 = vmatpush.msra.mxu0 %v336
    %387 = vmatpush.msra.mxu0 %v333
    %388 = vmatpush.msra.mxu0 %v330
    %389 = vmatpush.msra.mxu0 %v327
    %390 = vmatpush.msra.mxu0 %v324
    %391 = vmatpush.msra.mxu0 %v321
    %392 = vmatpush.msra.mxu0 %v318
    %393 = vmatpush.msra.mxu0 %v315
    %394 = vmatpush.msra.mxu0 %v312
    %395 = vmatpush.msra.mxu0 %v309
    %396 = vmatpush.msra.mxu0 %v306
    %397 = vmatmul.f32.gmra.mxu0 %v304
    %v398 = vpop.f32.mrf.mxu0
    %v399 = vadd.f32 %v356, %v398
    %400 = vdwg.mxu0
    %401 = vmatpush.msra.mxu0 %v352
    %402 = vmatpush.msra.mxu0 %v349
    %403 = vmatpush.msra.mxu0 %v346
    %404 = vmatpush.msra.mxu0 %v343
    %405 = vmatpush.msra.mxu0 %v340
    %406 = vmatpush.msra.mxu0 %v337
    %407 = vmatpush.msra.mxu0 %v334
    %408 = vmatpush.msra.mxu0 %v331
    %409 = vmatpush.msra.mxu0 %v328
    %410 = vmatpush.msra.mxu0 %v325
    %411 = vmatpush.msra.mxu0 %v322
    %412 = vmatpush.msra.mxu0 %v319
    %413 = vmatpush.msra.mxu0 %v316
    %414 = vmatpush.msra.mxu0 %v313
    %415 = vmatpush.msra.mxu0 %v310
    %416 = vmatpush.msra.mxu0 %v307
    %417 = vmatmul.f32.gmra.mxu0 %v304
    %v418 = vpop.f32.mrf.mxu0
    %v419 = vadd.f32 %v357, %v418
    %420 = vdwg.mxu0
    %v421 = vadd.f32 %v301, %v379
    %v422 = vxor.u32 %v421, 2147483648
    %v423 = vmul.f32 %v422, 1.442695
    %v424 = vpow.pop %v423
    %v425 = vadd.f32 %v424, 1.0
    %v426 = vrcp.pop %v425
    %v427 = vmul.f32 %v425, %v426
    %v428 = vsub.f32 1.0, %v427
    %v429 = vmul.f32 %v426, %v428
    %v430 = vadd.f32 %v426, %v429
    %vm431 = vweird.f32 %v425
    %vm432 = vweird.f32 %v426
    %vm433 = vmor %vm431, %vm432
    %v434 = vsel %vm433, %v426, %v430
    %v435 = vand.u32 2147483647, %v425
    %vm436 = vcmp.eq.f32.partialorder %v435, 8.507059e+37
    %v437 = vand.u32 %v425, 2147483648
    %v438 = vor.u32 1.1754944e-38, %v437
    %v439 = vsel %vm436, %v438, %v434
    %v440 = vmul.f32 1.0, %v439
    %v441 = vadd.f32 %v302, %v399
    %v442 = vxor.u32 %v441, 2147483648
    %v443 = vmul.f32 %v442, 1.442695
    %v444 = vpow.pop %v443
    %v445 = vadd.f32 %v444, 1.0
    %v446 = vrcp.pop %v445
    %v447 = vmul.f32 %v445, %v446
    %v448 = vsub.f32 1.0, %v447
    %v449 = vmul.f32 %v446, %v448
    %v450 = vadd.f32 %v446, %v449
    %vm451 = vweird.f32 %v445
    %vm452 = vweird.f32 %v446
    %vm453 = vmor %vm451, %vm452
    %v454 = vsel %vm453, %v446, %v450
    %v455 = vand.u32 2147483647, %v445
    %vm456 = vcmp.eq.f32.partialorder %v455, 8.507059e+37
    %v457 = vand.u32 %v445, 2147483648
    %v458 = vor.u32 1.1754944e-38, %v457
    %v459 = vsel %vm456, %v458, %v454
    %v460 = vmul.f32 1.0, %v459
    %v461 = vmul.f32 %v440, %v419
    %v462 = vadd.f32 %v303, %v461
    %v463 = vtanh.pop %v462
    %v464 = vsub.f32 1.0, %v460
    %v465 = vmul.f32 %v464, %v463
    %v466 = vmul.f32 %v460, %v304
    %v467 = vadd.f32 %v465, %v466
    %468 = vst [vmem:[#allocation2] sm:$0xff] %v467
    %469 = vst [vmem:[#allocation12] sm:$0xff] %v467
    %s470 = smul.u32 1, 3
    %s471 = smul.addr %s470, 8
    %s472 = scalar_lea.vmem [#allocation3], %s471
    %v473 = vld [vmem:[%s472] sm:$0xff]
    %v474 = vld [vmem:[%s472 + $0x8] sm:$0xff]
    %v475 = vld [vmem:[%s472 + $0x10] sm:$0xff]
    %v476 = vld [vmem:[#allocation2] sm:$0xff]
    %v477 = vld [vmem:[#allocation10] sm:$0xff]
    %v478 = vld [vmem:[#allocation10 + $0x8] sm:$0xff]
    %v479 = vld [vmem:[#allocation10 + $0x10] sm:$0xff]
    %v480 = vld [vmem:[#allocation10 + $0x18] sm:$0xff]
    %v481 = vld [vmem:[#allocation10 + $0x20] sm:$0xff]
    %v482 = vld [vmem:[#allocation10 + $0x28] sm:$0xff]
    %v483 = vld [vmem:[#allocation10 + $0x30] sm:$0xff]
    %v484 = vld [vmem:[#allocation10 + $0x38] sm:$0xff]
    %v485 = vld [vmem:[#allocation10 + $0x40] sm:$0xff]
    %v486 = vld [vmem:[#allocation10 + $0x48] sm:$0xff]
    %v487 = vld [vmem:[#allocation10 + $0x50] sm:$0xff]
    %v488 = vld [vmem:[#allocation10 + $0x58] sm:$0xff]
    %v489 = vld [vmem:[#allocation10 + $0x60] sm:$0xff]
    %v490 = vld [vmem:[#allocation10 + $0x68] sm:$0xff]
    %v491 = vld [vmem:[#allocation10 + $0x70] sm:$0xff]
    %v492 = vld [vmem:[#allocation10 + $0x78] sm:$0xff]
    %v493 = vld [vmem:[#allocation10 + $0x80] sm:$0xff]
    %v494 = vld [vmem:[#allocation10 + $0x88] sm:$0xff]
    %v495 = vld [vmem:[#allocation10 + $0x90] sm:$0xff]
    %v496 = vld [vmem:[#allocation10 + $0x98] sm:$0xff]
    %v497 = vld [vmem:[#allocation10 + $0xa0] sm:$0xff]
    %v498 = vld [vmem:[#allocation10 + $0xa8] sm:$0xff]
    %v499 = vld [vmem:[#allocation10 + $0xb0] sm:$0xff]
    %v500 = vld [vmem:[#allocation10 + $0xb8] sm:$0xff]
    %v501 = vld [vmem:[#allocation10 + $0xc0] sm:$0xff]
    %v502 = vld [vmem:[#allocation10 + $0xc8] sm:$0xff]
    %v503 = vld [vmem:[#allocation10 + $0xd0] sm:$0xff]
    %v504 = vld [vmem:[#allocation10 + $0xd8] sm:$0xff]
    %v505 = vld [vmem:[#allocation10 + $0xe0] sm:$0xff]
    %v506 = vld [vmem:[#allocation10 + $0xe8] sm:$0xff]
    %v507 = vld [vmem:[#allocation10 + $0xf0] sm:$0xff]
    %v508 = vld [vmem:[#allocation10 + $0xf8] sm:$0xff]
    %v509 = vld [vmem:[#allocation10 + $0x100] sm:$0xff]
    %v510 = vld [vmem:[#allocation10 + $0x108] sm:$0xff]
    %v511 = vld [vmem:[#allocation10 + $0x110] sm:$0xff]
    %v512 = vld [vmem:[#allocation10 + $0x118] sm:$0xff]
    %v513 = vld [vmem:[#allocation10 + $0x120] sm:$0xff]
    %v514 = vld [vmem:[#allocation10 + $0x128] sm:$0xff]
    %v515 = vld [vmem:[#allocation10 + $0x130] sm:$0xff]
    %v516 = vld [vmem:[#allocation10 + $0x138] sm:$0xff]
    %v517 = vld [vmem:[#allocation10 + $0x140] sm:$0xff]
    %v518 = vld [vmem:[#allocation10 + $0x148] sm:$0xff]
    %v519 = vld [vmem:[#allocation10 + $0x150] sm:$0xff]
    %v520 = vld [vmem:[#allocation10 + $0x158] sm:$0xff]
    %v521 = vld [vmem:[#allocation10 + $0x160] sm:$0xff]
    %v522 = vld [vmem:[#allocation10 + $0x168] sm:$0xff]
    %v523 = vld [vmem:[#allocation10 + $0x170] sm:$0xff]
    %v524 = vld [vmem:[#allocation10 + $0x178] sm:$0xff]
    %v525 = vld [vmem:[%s4] sm:$0x7]
    %v527 = vperm.slane %v525, 0
    %v528 = vperm.slane %v525, 1
    %v529 = vperm.slane %v525, 2
    %533 = vmatpush.msra.mxu0 %v522
    %534 = vmatpush.msra.mxu0 %v519
    %535 = vmatpush.msra.mxu0 %v516
    %536 = vmatpush.msra.mxu0 %v513
    %537 = vmatpush.msra.mxu0 %v510
    %538 = vmatpush.msra.mxu0 %v507
    %539 = vmatpush.msra.mxu0 %v504
    %540 = vmatpush.msra.mxu0 %v501
    %541 = vmatpush.msra.mxu0 %v498
    %542 = vmatpush.msra.mxu0 %v495
    %543 = vmatpush.msra.mxu0 %v492
    %544 = vmatpush.msra.mxu0 %v489
    %545 = vmatpush.msra.mxu0 %v486
    %546 = vmatpush.msra.mxu0 %v483
    %547 = vmatpush.msra.mxu0 %v480
    %548 = vmatpush.msra.mxu0 %v477
    %549 = vmatmul.f32.gmra.mxu0 %v476
    %v550 = vpop.f32.mrf.mxu0
    %v551 = vadd.f32 %v527, %v550
    %552 = vdwg.mxu0
    %553 = vmatpush.msra.mxu0 %v523
    %554 = vmatpush.msra.mxu0 %v520
    %555 = vmatpush.msra.mxu0 %v517
    %556 = vmatpush.msra.mxu0 %v514
    %557 = vmatpush.msra.mxu0 %v511
    %558 = vmatpush.msra.mxu0 %v508
    %559 = vmatpush.msra.mxu0 %v505
    %560 = vmatpush.msra.mxu0 %v502
    %561 = vmatpush.msra.mxu0 %v499
    %562 = vmatpush.msra.mxu0 %v496
    %563 = vmatpush.msra.mxu0 %v493
    %564 = vmatpush.msra.mxu0 %v490
    %565 = vmatpush.msra.mxu0 %v487
    %566 = vmatpush.msra.mxu0 %v484
    %567 = vmatpush.msra.mxu0 %v481
    %568 = vmatpush.msra.mxu0 %v478
    %569 = vmatmul.f32.gmra.mxu0 %v476
    %v570 = vpop.f32.mrf.mxu0
    %v571 = vadd.f32 %v528, %v570
    %572 = vdwg.mxu0
    %573 = vmatpush.msra.mxu0 %v524
    %574 = vmatpush.msra.mxu0 %v521
    %575 = vmatpush.msra.mxu0 %v518
    %576 = vmatpush.msra.mxu0 %v515
    %577 = vmatpush.msra.mxu0 %v512
    %578 = vmatpush.msra.mxu0 %v509
    %579 = vmatpush.msra.mxu0 %v506
    %580 = vmatpush.msra.mxu0 %v503
    %581 = vmatpush.msra.mxu0 %v500
    %582 = vmatpush.msra.mxu0 %v497
    %583 = vmatpush.msra.mxu0 %v494
    %584 = vmatpush.msra.mxu0 %v491
    %585 = vmatpush.msra.mxu0 %v488
    %586 = vmatpush.msra.mxu0 %v485
    %587 = vmatpush.msra.mxu0 %v482
    %588 = vmatpush.msra.mxu0 %v479
    %589 = vmatmul.f32.gmra.mxu0 %v476
    %v590 = vpop.f32.mrf.mxu0
    %v591 = vadd.f32 %v529, %v590
    %592 = vdwg.mxu0
    %v593 = vadd.f32 %v473, %v551
    %v594 = vxor.u32 %v593, 2147483648
    %v595 = vmul.f32 %v594, 1.442695
    %v596 = vpow.pop %v595
    %v597 = vadd.f32 %v596, 1.0
    %v598 = vrcp.pop %v597
    %v599 = vmul.f32 %v597, %v598
    %v600 = vsub.f32 1.0, %v599
    %v601 = vmul.f32 %v598, %v600
    %v602 = vadd.f32 %v598, %v601
    %vm603 = vweird.f32 %v597
    %vm604 = vweird.f32 %v598
    %vm605 = vmor %vm603, %vm604
    %v606 = vsel %vm605, %v598, %v602
    %v607 = vand.u32 2147483647, %v597
    %vm608 = vcmp.eq.f32.partialorder %v607, 8.507059e+37
    %v609 = vand.u32 %v597, 2147483648
    %v610 = vor.u32 1.1754944e-38, %v609
    %v611 = vsel %vm608, %v610, %v606
    %v612 = vmul.f32 1.0, %v611
    %v613 = vadd.f32 %v474, %v571
    %v614 = vxor.u32 %v613, 2147483648
    %v615 = vmul.f32 %v614, 1.442695
    %v616 = vpow.pop %v615
    %v617 = vadd.f32 %v616, 1.0
    %v618 = vrcp.pop %v617
    %v619 = vmul.f32 %v617, %v618
    %v620 = vsub.f32 1.0, %v619
    %v621 = vmul.f32 %v618, %v620
    %v622 = vadd.f32 %v618, %v621
    %vm623 = vweird.f32 %v617
    %vm624 = vweird.f32 %v618
    %vm625 = vmor %vm623, %vm624
    %v626 = vsel %vm625, %v618, %v622
    %v627 = vand.u32 2147483647, %v617
    %vm628 = vcmp.eq.f32.partialorder %v627, 8.507059e+37
    %v629 = vand.u32 %v617, 2147483648
    %v630 = vor.u32 1.1754944e-38, %v629
    %v631 = vsel %vm628, %v630, %v626
    %v632 = vmul.f32 1.0, %v631
    %v633 = vmul.f32 %v612, %v591
    %v634 = vadd.f32 %v475, %v633
    %v635 = vtanh.pop %v634
    %v636 = vsub.f32 1.0, %v632
    %v637 = vmul.f32 %v636, %v635
    %v638 = vmul.f32 %v632, %v476
    %v639 = vadd.f32 %v637, %v638
    %640 = vst [vmem:[#allocation2] sm:$0xff] %v639
    %s641 = scalar_lea.vmem [#allocation12], 8
    %642 = vst [vmem:[%s641] sm:$0xff] %v639
    %s643 = smul.u32 2, 3
    %s644 = smul.addr %s643, 8
    %s645 = scalar_lea.vmem [#allocation3], %s644
    %v646 = vld [vmem:[%s645] sm:$0xff]
    %v647 = vld [vmem:[%s645 + $0x8] sm:$0xff]
    %v648 = vld [vmem:[%s645 + $0x10] sm:$0xff]
    %v649 = vld [vmem:[#allocation2] sm:$0xff]
    %v650 = vld [vmem:[#allocation10] sm:$0xff]
    %v651 = vld [vmem:[#allocation10 + $0x8] sm:$0xff]
    %v652 = vld [vmem:[#allocation10 + $0x10] sm:$0xff]
    %v653 = vld [vmem:[#allocation10 + $0x18] sm:$0xff]
    %v654 = vld [vmem:[#allocation10 + $0x20] sm:$0xff]
    %v655 = vld [vmem:[#allocation10 + $0x28] sm:$0xff]
    %v656 = vld [vmem:[#allocation10 + $0x30] sm:$0xff]
    %v657 = vld [vmem:[#allocation10 + $0x38] sm:$0xff]
    %v658 = vld [vmem:[#allocation10 + $0x40] sm:$0xff]
    %v659 = vld [vmem:[#allocation10 + $0x48] sm:$0xff]
    %v660 = vld [vmem:[#allocation10 + $0x50] sm:$0xff]
    %v661 = vld [vmem:[#allocation10 + $0x58] sm:$0xff]
    %v662 = vld [vmem:[#allocation10 + $0x60] sm:$0xff]
    %v663 = vld [vmem:[#allocation10 + $0x68] sm:$0xff]
    %v664 = vld [vmem:[#allocation10 + $0x70] sm:$0xff]
    %v665 = vld [vmem:[#allocation10 + $0x78] sm:$0xff]
    %v666 = vld [vmem:[#allocation10 + $0x80] sm:$0xff]
    %v667 = vld [vmem:[#allocation10 + $0x88] sm:$0xff]
    %v668 = vld [vmem:[#allocation10 + $0x90] sm:$0xff]
    %v669 = vld [vmem:[#allocation10 + $0x98] sm:$0xff]
    %v670 = vld [vmem:[#allocation10 + $0xa0] sm:$0xff]
    %v671 = vld [vmem:[#allocation10 + $0xa8] sm:$0xff]
    %v672 = vld [vmem:[#allocation10 + $0xb0] sm:$0xff]
    %v673 = vld [vmem:[#allocation10 + $0xb8] sm:$0xff]
    %v674 = vld [vmem:[#allocation10 + $0xc0] sm:$0xff]
    %v675 = vld [vmem:[#allocation10 + $0xc8] sm:$0xff]
    %v676 = vld [vmem:[#allocation10 + $0xd0] sm:$0xff]
    %v677 = vld [vmem:[#allocation10 + $0xd8] sm:$0xff]
    %v678 = vld [vmem:[#allocation10 + $0xe0] sm:$0xff]
    %v679 = vld [vmem:[#allocation10 + $0xe8] sm:$0xff]
    %v680 = vld [vmem:[#allocation10 + $0xf0] sm:$0xff]
    %v681 = vld [vmem:[#allocation10 + $0xf8] sm:$0xff]
    %v682 = vld [vmem:[#allocation10 + $0x100] sm:$0xff]
    %v683 = vld [vmem:[#allocation10 + $0x108] sm:$0xff]
    %v684 = vld [vmem:[#allocation10 + $0x110] sm:$0xff]
    %v685 = vld [vmem:[#allocation10 + $0x118] sm:$0xff]
    %v686 = vld [vmem:[#allocation10 + $0x120] sm:$0xff]
    %v687 = vld [vmem:[#allocation10 + $0x128] sm:$0xff]
    %v688 = vld [vmem:[#allocation10 + $0x130] sm:$0xff]
    %v689 = vld [vmem:[#allocation10 + $0x138] sm:$0xff]
    %v690 = vld [vmem:[#allocation10 + $0x140] sm:$0xff]
    %v691 = vld [vmem:[#allocation10 + $0x148] sm:$0xff]
    %v692 = vld [vmem:[#allocation10 + $0x150] sm:$0xff]
    %v693 = vld [vmem:[#allocation10 + $0x158] sm:$0xff]
    %v694 = vld [vmem:[#allocation10 + $0x160] sm:$0xff]
    %v695 = vld [vmem:[#allocation10 + $0x168] sm:$0xff]
    %v696 = vld [vmem:[#allocation10 + $0x170] sm:$0xff]
    %v697 = vld [vmem:[#allocation10 + $0x178] sm:$0xff]
    %v698 = vld [vmem:[%s4] sm:$0x7]
    %v700 = vperm.slane %v698, 0
    %v701 = vperm.slane %v698, 1
    %v702 = vperm.slane %v698, 2
    %706 = vmatpush.msra.mxu0 %v695
    %707 = vmatpush.msra.mxu0 %v692
    %708 = vmatpush.msra.mxu0 %v689
    %709 = vmatpush.msra.mxu0 %v686
    %710 = vmatpush.msra.mxu0 %v683
    %711 = vmatpush.msra.mxu0 %v680
    %712 = vmatpush.msra.mxu0 %v677
    %713 = vmatpush.msra.mxu0 %v674
    %714 = vmatpush.msra.mxu0 %v671
    %715 = vmatpush.msra.mxu0 %v668
    %716 = vmatpush.msra.mxu0 %v665
    %717 = vmatpush.msra.mxu0 %v662
    %718 = vmatpush.msra.mxu0 %v659
    %719 = vmatpush.msra.mxu0 %v656
    %720 = vmatpush.msra.mxu0 %v653
    %721 = vmatpush.msra.mxu0 %v650
    %722 = vmatmul.f32.gmra.mxu0 %v649
    %v723 = vpop.f32.mrf.mxu0
    %v724 = vadd.f32 %v700, %v723
    %725 = vdwg.mxu0
    %726 = vmatpush.msra.mxu0 %v696
    %727 = vmatpush.msra.mxu0 %v693
    %728 = vmatpush.msra.mxu0 %v690
    %729 = vmatpush.msra.mxu0 %v687
    %730 = vmatpush.msra.mxu0 %v684
    %731 = vmatpush.msra.mxu0 %v681
    %732 = vmatpush.msra.mxu0 %v678
    %733 = vmatpush.msra.mxu0 %v675
    %734 = vmatpush.msra.mxu0 %v672
    %735 = vmatpush.msra.mxu0 %v669
    %736 = vmatpush.msra.mxu0 %v666
    %737 = vmatpush.msra.mxu0 %v663
    %738 = vmatpush.msra.mxu0 %v660
    %739 = vmatpush.msra.mxu0 %v657
    %740 = vmatpush.msra.mxu0 %v654
    %741 = vmatpush.msra.mxu0 %v651
    %742 = vmatmul.f32.gmra.mxu0 %v649
    %v743 = vpop.f32.mrf.mxu0
    %v744 = vadd.f32 %v701, %v743
    %745 = vdwg.mxu0
    %746 = vmatpush.msra.mxu0 %v697
    %747 = vmatpush.msra.mxu0 %v694
    %748 = vmatpush.msra.mxu0 %v691
    %749 = vmatpush.msra.mxu0 %v688
    %750 = vmatpush.msra.mxu0 %v685
    %751 = vmatpush.msra.mxu0 %v682
    %752 = vmatpush.msra.mxu0 %v679
    %753 = vmatpush.msra.mxu0 %v676
    %754 = vmatpush.msra.mxu0 %v673
    %755 = vmatpush.msra.mxu0 %v670
    %756 = vmatpush.msra.mxu0 %v667
    %757 = vmatpush.msra.mxu0 %v664
    %758 = vmatpush.msra.mxu0 %v661
    %759 = vmatpush.msra.mxu0 %v658
    %760 = vmatpush.msra.mxu0 %v655
    %761 = vmatpush.msra.mxu0 %v652
    %762 = vmatmul.f32.gmra.mxu0 %v649
    %v763 = vpop.f32.mrf.mxu0
    %v764 = vadd.f32 %v702, %v763
    %765 = vdwg.mxu0
    %v766 = vadd.f32 %v646, %v724
    %v767 = vxor.u32 %v766, 2147483648
    %v768 = vmul.f32 %v767, 1.442695
    %v769 = vpow.pop %v768
    %v770 = vadd.f32 %v769, 1.0
    %v771 = vrcp.pop %v770
    %v772 = vmul.f32 %v770, %v771
    %v773 = vsub.f32 1.0, %v772
    %v774 = vmul.f32 %v771, %v773
    %v775 = vadd.f32 %v771, %v774
    %vm776 = vweird.f32 %v770
    %vm777 = vweird.f32 %v771
    %vm778 = vmor %vm776, %vm777
    %v779 = vsel %vm778, %v771, %v775
    %v780 = vand.u32 2147483647, %v770
    %vm781 = vcmp.eq.f32.partialorder %v780, 8.507059e+37
    %v782 = vand.u32 %v770, 2147483648
    %v783 = vor.u32 1.1754944e-38, %v782
    %v784 = vsel %vm781, %v783, %v779
    %v785 = vmul.f32 1.0, %v784
    %v786 = vadd.f32 %v647, %v744
    %v787 = vxor.u32 %v786, 2147483648
    %v788 = vmul.f32 %v787, 1.442695
    %v789 = vpow.pop %v788
    %v790 = vadd.f32 %v789, 1.0
    %v791 = vrcp.pop %v790
    %v792 = vmul.f32 %v790, %v791
    %v793 = vsub.f32 1.0, %v792
    %v794 = vmul.f32 %v791, %v793
    %v795 = vadd.f32 %v791, %v794
    %vm796 = vweird.f32 %v790
    %vm797 = vweird.f32 %v791
    %vm798 = vmor %vm796, %vm797
    %v799 = vsel %vm798, %v791, %v795
    %v800 = vand.u32 2147483647, %v790
    %vm801 = vcmp.eq.f32.partialorder %v800, 8.507059e+37
    %v802 = vand.u32 %v790, 2147483648
    %v803 = vor.u32 1.1754944e-38, %v802
    %v804 = vsel %vm801, %v803, %v799
    %v805 = vmul.f32 1.0, %v804
    %v806 = vmul.f32 %v785, %v764
    %v807 = vadd.f32 %v648, %v806
    %v808 = vtanh.pop %v807
    %v809 = vsub.f32 1.0, %v805
    %v810 = vmul.f32 %v809, %v808
    %v811 = vmul.f32 %v805, %v649
    %v812 = vadd.f32 %v810, %v811
    %813 = vst [vmem:[#allocation2] sm:$0xff] %v812
    %s814 = scalar_lea.vmem [#allocation12], 16
    %815 = vst [vmem:[%s814] sm:$0xff] %v812
    %s816 = smul.u32 3, 3
    %s817 = smul.addr %s816, 8
    %s818 = scalar_lea.vmem [#allocation3], %s817
    %v819 = vld [vmem:[%s818] sm:$0xff]
    %v820 = vld [vmem:[%s818 + $0x8] sm:$0xff]
    %v821 = vld [vmem:[%s818 + $0x10] sm:$0xff]
    %v822 = vld [vmem:[#allocation2] sm:$0xff]
    %v823 = vld [vmem:[#allocation10] sm:$0xff]
    %v824 = vld [vmem:[#allocation10 + $0x8] sm:$0xff]
    %v825 = vld [vmem:[#allocation10 + $0x10] sm:$0xff]
    %v826 = vld [vmem:[#allocation10 + $0x18] sm:$0xff]
    %v827 = vld [vmem:[#allocation10 + $0x20] sm:$0xff]
    %v828 = vld [vmem:[#allocation10 + $0x28] sm:$0xff]
    %v829 = vld [vmem:[#allocation10 + $0x30] sm:$0xff]
    %v830 = vld [vmem:[#allocation10 + $0x38] sm:$0xff]
    %v831 = vld [vmem:[#allocation10 + $0x40] sm:$0xff]
    %v832 = vld [vmem:[#allocation10 + $0x48] sm:$0xff]
    %v833 = vld [vmem:[#allocation10 + $0x50] sm:$0xff]
    %v834 = vld [vmem:[#allocation10 + $0x58] sm:$0xff]
    %v835 = vld [vmem:[#allocation10 + $0x60] sm:$0xff]
    %v836 = vld [vmem:[#allocation10 + $0x68] sm:$0xff]
    %v837 = vld [vmem:[#allocation10 + $0x70] sm:$0xff]
    %v838 = vld [vmem:[#allocation10 + $0x78] sm:$0xff]
    %v839 = vld [vmem:[#allocation10 + $0x80] sm:$0xff]
    %v840 = vld [vmem:[#allocation10 + $0x88] sm:$0xff]
    %v841 = vld [vmem:[#allocation10 + $0x90] sm:$0xff]
    %v842 = vld [vmem:[#allocation10 + $0x98] sm:$0xff]
    %v843 = vld [vmem:[#allocation10 + $0xa0] sm:$0xff]
    %v844 = vld [vmem:[#allocation10 + $0xa8] sm:$0xff]
    %v845 = vld [vmem:[#allocation10 + $0xb0] sm:$0xff]
    %v846 = vld [vmem:[#allocation10 + $0xb8] sm:$0xff]
    %v847 = vld [vmem:[#allocation10 + $0xc0] sm:$0xff]
    %v848 = vld [vmem:[#allocation10 + $0xc8] sm:$0xff]
    %v849 = vld [vmem:[#allocation10 + $0xd0] sm:$0xff]
    %v850 = vld [vmem:[#allocation10 + $0xd8] sm:$0xff]
    %v851 = vld [vmem:[#allocation10 + $0xe0] sm:$0xff]
    %v852 = vld [vmem:[#allocation10 + $0xe8] sm:$0xff]
    %v853 = vld [vmem:[#allocation10 + $0xf0] sm:$0xff]
    %v854 = vld [vmem:[#allocation10 + $0xf8] sm:$0xff]
    %v855 = vld [vmem:[#allocation10 + $0x100] sm:$0xff]
    %v856 = vld [vmem:[#allocation10 + $0x108] sm:$0xff]
    %v857 = vld [vmem:[#allocation10 + $0x110] sm:$0xff]
    %v858 = vld [vmem:[#allocation10 + $0x118] sm:$0xff]
    %v859 = vld [vmem:[#allocation10 + $0x120] sm:$0xff]
    %v860 = vld [vmem:[#allocation10 + $0x128] sm:$0xff]
    %v861 = vld [vmem:[#allocation10 + $0x130] sm:$0xff]
    %v862 = vld [vmem:[#allocation10 + $0x138] sm:$0xff]
    %v863 = vld [vmem:[#allocation10 + $0x140] sm:$0xff]
    %v864 = vld [vmem:[#allocation10 + $0x148] sm:$0xff]
    %v865 = vld [vmem:[#allocation10 + $0x150] sm:$0xff]
    %v866 = vld [vmem:[#allocation10 + $0x158] sm:$0xff]
    %v867 = vld [vmem:[#allocation10 + $0x160] sm:$0xff]
    %v868 = vld [vmem:[#allocation10 + $0x168] sm:$0xff]
    %v869 = vld [vmem:[#allocation10 + $0x170] sm:$0xff]
    %v870 = vld [vmem:[#allocation10 + $0x178] sm:$0xff]
    %v871 = vld [vmem:[%s4] sm:$0x7]
    %v873 = vperm.slane %v871, 0
    %v874 = vperm.slane %v871, 1
    %v875 = vperm.slane %v871, 2
    %879 = vmatpush.msra.mxu0 %v868
    %880 = vmatpush.msra.mxu0 %v865
    %881 = vmatpush.msra.mxu0 %v862
    %882 = vmatpush.msra.mxu0 %v859
    %883 = vmatpush.msra.mxu0 %v856
    %884 = vmatpush.msra.mxu0 %v853
    %885 = vmatpush.msra.mxu0 %v850
    %886 = vmatpush.msra.mxu0 %v847
    %887 = vmatpush.msra.mxu0 %v844
    %888 = vmatpush.msra.mxu0 %v841
    %889 = vmatpush.msra.mxu0 %v838
    %890 = vmatpush.msra.mxu0 %v835
    %891 = vmatpush.msra.mxu0 %v832
    %892 = vmatpush.msra.mxu0 %v829
    %893 = vmatpush.msra.mxu0 %v826
    %894 = vmatpush.msra.mxu0 %v823
    %895 = vmatmul.f32.gmra.mxu0 %v822
    %v896 = vpop.f32.mrf.mxu0
    %v897 = vadd.f32 %v873, %v896
    %898 = vdwg.mxu0
    %899 = vmatpush.msra.mxu0 %v869
    %900 = vmatpush.msra.mxu0 %v866
    %901 = vmatpush.msra.mxu0 %v863
    %902 = vmatpush.msra.mxu0 %v860
    %903 = vmatpush.msra.mxu0 %v857
    %904 = vmatpush.msra.mxu0 %v854
    %905 = vmatpush.msra.mxu0 %v851
    %906 = vmatpush.msra.mxu0 %v848
    %907 = vmatpush.msra.mxu0 %v845
    %908 = vmatpush.msra.mxu0 %v842
    %909 = vmatpush.msra.mxu0 %v839
    %910 = vmatpush.msra.mxu0 %v836
    %911 = vmatpush.msra.mxu0 %v833
    %912 = vmatpush.msra.mxu0 %v830
    %913 = vmatpush.msra.mxu0 %v827
    %914 = vmatpush.msra.mxu0 %v824
    %915 = vmatmul.f32.gmra.mxu0 %v822
    %v916 = vpop.f32.mrf.mxu0
    %v917 = vadd.f32 %v874, %v916
    %918 = vdwg.mxu0
    %919 = vmatpush.msra.mxu0 %v870
    %920 = vmatpush.msra.mxu0 %v867
    %921 = vmatpush.msra.mxu0 %v864
    %922 = vmatpush.msra.mxu0 %v861
    %923 = vmatpush.msra.mxu0 %v858
    %924 = vmatpush.msra.mxu0 %v855
    %925 = vmatpush.msra.mxu0 %v852
    %926 = vmatpush.msra.mxu0 %v849
    %927 = vmatpush.msra.mxu0 %v846
    %928 = vmatpush.msra.mxu0 %v843
    %929 = vmatpush.msra.mxu0 %v840
    %930 = vmatpush.msra.mxu0 %v837
    %931 = vmatpush.msra.mxu0 %v834
    %932 = vmatpush.msra.mxu0 %v831
    %933 = vmatpush.msra.mxu0 %v828
    %934 = vmatpush.msra.mxu0 %v825
    %935 = vmatmul.f32.gmra.mxu0 %v822
    %v936 = vpop.f32.mrf.mxu0
    %v937 = vadd.f32 %v875, %v936
    %938 = vdwg.mxu0
    %v939 = vadd.f32 %v819, %v897
    %v940 = vxor.u32 %v939, 2147483648
    %v941 = vmul.f32 %v940, 1.442695
    %v942 = vpow.pop %v941
    %v943 = vadd.f32 %v942, 1.0
    %v944 = vrcp.pop %v943
    %v945 = vmul.f32 %v943, %v944
    %v946 = vsub.f32 1.0, %v945
    %v947 = vmul.f32 %v944, %v946
    %v948 = vadd.f32 %v944, %v947
    %vm949 = vweird.f32 %v943
    %vm950 = vweird.f32 %v944
    %vm951 = vmor %vm949, %vm950
    %v952 = vsel %vm951, %v944, %v948
    %v953 = vand.u32 2147483647, %v943
    %vm954 = vcmp.eq.f32.partialorder %v953, 8.507059e+37
    %v955 = vand.u32 %v943, 2147483648
    %v956 = vor.u32 1.1754944e-38, %v955
    %v957 = vsel %vm954, %v956, %v952
    %v958 = vmul.f32 1.0, %v957
    %v959 = vadd.f32 %v820, %v917
    %v960 = vxor.u32 %v959, 2147483648
    %v961 = vmul.f32 %v960, 1.442695
    %v962 = vpow.pop %v961
    %v963 = vadd.f32 %v962, 1.0
    %v964 = vrcp.pop %v963
    %v965 = vmul.f32 %v963, %v964
    %v966 = vsub.f32 1.0, %v965
    %v967 = vmul.f32 %v964, %v966
    %v968 = vadd.f32 %v964, %v967
    %vm969 = vweird.f32 %v963
    %vm970 = vweird.f32 %v964
    %vm971 = vmor %vm969, %vm970
    %v972 = vsel %vm971, %v964, %v968
    %v973 = vand.u32 2147483647, %v963
    %vm974 = vcmp.eq.f32.partialorder %v973, 8.507059e+37
    %v975 = vand.u32 %v963, 2147483648
    %v976 = vor.u32 1.1754944e-38, %v975
    %v977 = vsel %vm974, %v976, %v972
    %v978 = vmul.f32 1.0, %v977
    %v979 = vmul.f32 %v958, %v937
    %v980 = vadd.f32 %v821, %v979
    %v981 = vtanh.pop %v980
    %v982 = vsub.f32 1.0, %v978
    %v983 = vmul.f32 %v982, %v981
    %v984 = vmul.f32 %v978, %v822
    %v985 = vadd.f32 %v983, %v984
    %986 = vst [vmem:[#allocation2] sm:$0xff] %v985
    %s987 = scalar_lea.vmem [#allocation12], 24
    %988 = vst [vmem:[%s987] sm:$0xff] %v985
    %s989 = smul.u32 4, 3
    %s990 = smul.addr %s989, 8
    %s991 = scalar_lea.vmem [#allocation3], %s990
    %v992 = vld [vmem:[%s991] sm:$0xff]
    %v993 = vld [vmem:[%s991 + $0x8] sm:$0xff]
    %v994 = vld [vmem:[%s991 + $0x10] sm:$0xff]
    %v995 = vld [vmem:[#allocation2] sm:$0xff]
    %v996 = vld [vmem:[#allocation10] sm:$0xff]
    %v997 = vld [vmem:[#allocation10 + $0x8] sm:$0xff]
    %v998 = vld [vmem:[#allocation10 + $0x10] sm:$0xff]
    %v999 = vld [vmem:[#allocation10 + $0x18] sm:$0xff]
    %v1000 = vld [vmem:[#allocation10 + $0x20] sm:$0xff]
    %v1001 = vld [vmem:[#allocation10 + $0x28] sm:$0xff]
    %v1002 = vld [vmem:[#allocation10 + $0x30] sm:$0xff]
    %v1003 = vld [vmem:[#allocation10 + $0x38] sm:$0xff]
    %v1004 = vld [vmem:[#allocation10 + $0x40] sm:$0xff]
    %v1005 = vld [vmem:[#allocation10 + $0x48] sm:$0xff]
    %v1006 = vld [vmem:[#allocation10 + $0x50] sm:$0xff]
    %v1007 = vld [vmem:[#allocation10 + $0x58] sm:$0xff]
    %v1008 = vld [vmem:[#allocation10 + $0x60] sm:$0xff]
    %v1009 = vld [vmem:[#allocation10 + $0x68] sm:$0xff]
    %v1010 = vld [vmem:[#allocation10 + $0x70] sm:$0xff]
    %v1011 = vld [vmem:[#allocation10 + $0x78] sm:$0xff]
    %v1012 = vld [vmem:[#allocation10 + $0x80] sm:$0xff]
    %v1013 = vld [vmem:[#allocation10 + $0x88] sm:$0xff]
    %v1014 = vld [vmem:[#allocation10 + $0x90] sm:$0xff]
    %v1015 = vld [vmem:[#allocation10 + $0x98] sm:$0xff]
    %v1016 = vld [vmem:[#allocation10 + $0xa0] sm:$0xff]
    %v1017 = vld [vmem:[#allocation10 + $0xa8] sm:$0xff]
    %v1018 = vld [vmem:[#allocation10 + $0xb0] sm:$0xff]
    %v1019 = vld [vmem:[#allocation10 + $0xb8] sm:$0xff]
    %v1020 = vld [vmem:[#allocation10 + $0xc0] sm:$0xff]
    %v1021 = vld [vmem:[#allocation10 + $0xc8] sm:$0xff]
    %v1022 = vld [vmem:[#allocation10 + $0xd0] sm:$0xff]
    %v1023 = vld [vmem:[#allocation10 + $0xd8] sm:$0xff]
    %v1024 = vld [vmem:[#allocation10 + $0xe0] sm:$0xff]
    %v1025 = vld [vmem:[#allocation10 + $0xe8] sm:$0xff]
    %v1026 = vld [vmem:[#allocation10 + $0xf0] sm:$0xff]
    %v1027 = vld [vmem:[#allocation10 + $0xf8] sm:$0xff]
    %v1028 = vld [vmem:[#allocation10 + $0x100] sm:$0xff]
    %v1029 = vld [vmem:[#allocation10 + $0x108] sm:$0xff]
    %v1030 = vld [vmem:[#allocation10 + $0x110] sm:$0xff]
    %v1031 = vld [vmem:[#allocation10 + $0x118] sm:$0xff]
    %v1032 = vld [vmem:[#allocation10 + $0x120] sm:$0xff]
    %v1033 = vld [vmem:[#allocation10 + $0x128] sm:$0xff]
    %v1034 = vld [vmem:[#allocation10 + $0x130] sm:$0xff]
    %v1035 = vld [vmem:[#allocation10 + $0x138] sm:$0xff]
    %v1036 = vld [vmem:[#allocation10 + $0x140] sm:$0xff]
    %v1037 = vld [vmem:[#allocation10 + $0x148] sm:$0xff]
    %v1038 = vld [vmem:[#allocation10 + $0x150] sm:$0xff]
    %v1039 = vld [vmem:[#allocation10 + $0x158] sm:$0xff]
    %v1040 = vld [vmem:[#allocation10 + $0x160] sm:$0xff]
    %v1041 = vld [vmem:[#allocation10 + $0x168] sm:$0xff]
    %v1042 = vld [vmem:[#allocation10 + $0x170] sm:$0xff]
    %v1043 = vld [vmem:[#allocation10 + $0x178] sm:$0xff]
    %v1044 = vld [vmem:[%s4] sm:$0x7]
    %v1046 = vperm.slane %v1044, 0
    %v1047 = vperm.slane %v1044, 1
    %v1048 = vperm.slane %v1044, 2
    %1052 = vmatpush.msra.mxu0 %v1041
    %1053 = vmatpush.msra.mxu0 %v1038
    %1054 = vmatpush.msra.mxu0 %v1035
    %1055 = vmatpush.msra.mxu0 %v1032
    %1056 = vmatpush.msra.mxu0 %v1029
    %1057 = vmatpush.msra.mxu0 %v1026
    %1058 = vmatpush.msra.mxu0 %v1023
    %1059 = vmatpush.msra.mxu0 %v1020
    %1060 = vmatpush.msra.mxu0 %v1017
    %1061 = vmatpush.msra.mxu0 %v1014
    %1062 = vmatpush.msra.mxu0 %v1011
    %1063 = vmatpush.msra.mxu0 %v1008
    %1064 = vmatpush.msra.mxu0 %v1005
    %1065 = vmatpush.msra.mxu0 %v1002
    %1066 = vmatpush.msra.mxu0 %v999
    %1067 = vmatpush.msra.mxu0 %v996
    %1068 = vmatmul.f32.gmra.mxu0 %v995
    %v1069 = vpop.f32.mrf.mxu0
    %v1070 = vadd.f32 %v1046, %v1069
    %1071 = vdwg.mxu0
    %1072 = vmatpush.msra.mxu0 %v1042
    %1073 = vmatpush.msra.mxu0 %v1039
    %1074 = vmatpush.msra.mxu0 %v1036
    %1075 = vmatpush.msra.mxu0 %v1033
    %1076 = vmatpush.msra.mxu0 %v1030
    %1077 = vmatpush.msra.mxu0 %v1027
    %1078 = vmatpush.msra.mxu0 %v1024
    %1079 = vmatpush.msra.mxu0 %v1021
    %1080 = vmatpush.msra.mxu0 %v1018
    %1081 = vmatpush.msra.mxu0 %v1015
    %1082 = vmatpush.msra.mxu0 %v1012
    %1083 = vmatpush.msra.mxu0 %v1009
    %1084 = vmatpush.msra.mxu0 %v1006
    %1085 = vmatpush.msra.mxu0 %v1003
    %1086 = vmatpush.msra.mxu0 %v1000
    %1087 = vmatpush.msra.mxu0 %v997
    %1088 = vmatmul.f32.gmra.mxu0 %v995
    %v1089 = vpop.f32.mrf.mxu0
    %v1090 = vadd.f32 %v1047, %v1089
    %1091 = vdwg.mxu0
    %1092 = vmatpush.msra.mxu0 %v1043
    %1093 = vmatpush.msra.mxu0 %v1040
    %1094 = vmatpush.msra.mxu0 %v1037
    %1095 = vmatpush.msra.mxu0 %v1034
    %1096 = vmatpush.msra.mxu0 %v1031
    %1097 = vmatpush.msra.mxu0 %v1028
    %1098 = vmatpush.msra.mxu0 %v1025
    %1099 = vmatpush.msra.mxu0 %v1022
    %1100 = vmatpush.msra.mxu0 %v1019
    %1101 = vmatpush.msra.mxu0 %v1016
    %1102 = vmatpush.msra.mxu0 %v1013
    %1103 = vmatpush.msra.mxu0 %v1010
    %1104 = vmatpush.msra.mxu0 %v1007
    %1105 = vmatpush.msra.mxu0 %v1004
    %1106 = vmatpush.msra.mxu0 %v1001
    %1107 = vmatpush.msra.mxu0 %v998
    %1108 = vmatmul.f32.gmra.mxu0 %v995
    %v1109 = vpop.f32.mrf.mxu0
    %v1110 = vadd.f32 %v1048, %v1109
    %1111 = vdwg.mxu0
    %v1112 = vadd.f32 %v992, %v1070
    %v1113 = vxor.u32 %v1112, 2147483648
    %v1114 = vmul.f32 %v1113, 1.442695
    %v1115 = vpow.pop %v1114
    %v1116 = vadd.f32 %v1115, 1.0
    %v1117 = vrcp.pop %v1116
    %v1118 = vmul.f32 %v1116, %v1117
    %v1119 = vsub.f32 1.0, %v1118
    %v1120 = vmul.f32 %v1117, %v1119
    %v1121 = vadd.f32 %v1117, %v1120
    %vm1122 = vweird.f32 %v1116
    %vm1123 = vweird.f32 %v1117
    %vm1124 = vmor %vm1122, %vm1123
    %v1125 = vsel %vm1124, %v1117, %v1121
    %v1126 = vand.u32 2147483647, %v1116
    %vm1127 = vcmp.eq.f32.partialorder %v1126, 8.507059e+37
    %v1128 = vand.u32 %v1116, 2147483648
    %v1129 = vor.u32 1.1754944e-38, %v1128
    %v1130 = vsel %vm1127, %v1129, %v1125
    %v1131 = vmul.f32 1.0, %v1130
    %v1132 = vadd.f32 %v993, %v1090
    %v1133 = vxor.u32 %v1132, 2147483648
    %v1134 = vmul.f32 %v1133, 1.442695
    %v1135 = vpow.pop %v1134
    %v1136 = vadd.f32 %v1135, 1.0
    %v1137 = vrcp.pop %v1136
    %v1138 = vmul.f32 %v1136, %v1137
    %v1139 = vsub.f32 1.0, %v1138
    %v1140 = vmul.f32 %v1137, %v1139
    %v1141 = vadd.f32 %v1137, %v1140
    %vm1142 = vweird.f32 %v1136
    %vm1143 = vweird.f32 %v1137
    %vm1144 = vmor %vm1142, %vm1143
    %v1145 = vsel %vm1144, %v1137, %v1141
    %v1146 = vand.u32 2147483647, %v1136
    %vm1147 = vcmp.eq.f32.partialorder %v1146, 8.507059e+37
    %v1148 = vand.u32 %v1136, 2147483648
    %v1149 = vor.u32 1.1754944e-38, %v1148
    %v1150 = vsel %vm1147, %v1149, %v1145
    %v1151 = vmul.f32 1.0, %v1150
    %v1152 = vmul.f32 %v1131, %v1110
    %v1153 = vadd.f32 %v994, %v1152
    %v1154 = vtanh.pop %v1153
    %v1155 = vsub.f32 1.0, %v1151
    %v1156 = vmul.f32 %v1155, %v1154
    %v1157 = vmul.f32 %v1151, %v995
    %v1158 = vadd.f32 %v1156, %v1157
    %1159 = vst [vmem:[#allocation2] sm:$0xff] %v1158
    %s1160 = scalar_lea.vmem [#allocation12], 32
    %1161 = vst [vmem:[%s1160] sm:$0xff] %v1158
    %s1162 = smul.u32 5, 3
    %s1163 = smul.addr %s1162, 8
    %s1164 = scalar_lea.vmem [#allocation3], %s1163
    %v1165 = vld [vmem:[%s1164] sm:$0xff]
    %v1166 = vld [vmem:[%s1164 + $0x8] sm:$0xff]
    %v1167 = vld [vmem:[%s1164 + $0x10] sm:$0xff]
    %v1168 = vld [vmem:[#allocation2] sm:$0xff]
    %v1169 = vld [vmem:[#allocation10] sm:$0xff]
    %v1170 = vld [vmem:[#allocation10 + $0x8] sm:$0xff]
    %v1171 = vld [vmem:[#allocation10 + $0x10] sm:$0xff]
    %v1172 = vld [vmem:[#allocation10 + $0x18] sm:$0xff]
    %v1173 = vld [vmem:[#allocation10 + $0x20] sm:$0xff]
    %v1174 = vld [vmem:[#allocation10 + $0x28] sm:$0xff]
    %v1175 = vld [vmem:[#allocation10 + $0x30] sm:$0xff]
    %v1176 = vld [vmem:[#allocation10 + $0x38] sm:$0xff]
    %v1177 = vld [vmem:[#allocation10 + $0x40] sm:$0xff]
    %v1178 = vld [vmem:[#allocation10 + $0x48] sm:$0xff]
    %v1179 = vld [vmem:[#allocation10 + $0x50] sm:$0xff]
    %v1180 = vld [vmem:[#allocation10 + $0x58] sm:$0xff]
    %v1181 = vld [vmem:[#allocation10 + $0x60] sm:$0xff]
    %v1182 = vld [vmem:[#allocation10 + $0x68] sm:$0xff]
    %v1183 = vld [vmem:[#allocation10 + $0x70] sm:$0xff]
    %v1184 = vld [vmem:[#allocation10 + $0x78] sm:$0xff]
    %v1185 = vld [vmem:[#allocation10 + $0x80] sm:$0xff]
    %v1186 = vld [vmem:[#allocation10 + $0x88] sm:$0xff]
    %v1187 = vld [vmem:[#allocation10 + $0x90] sm:$0xff]
    %v1188 = vld [vmem:[#allocation10 + $0x98] sm:$0xff]
    %v1189 = vld [vmem:[#allocation10 + $0xa0] sm:$0xff]
    %v1190 = vld [vmem:[#allocation10 + $0xa8] sm:$0xff]
    %v1191 = vld [vmem:[#allocation10 + $0xb0] sm:$0xff]
    %v1192 = vld [vmem:[#allocation10 + $0xb8] sm:$0xff]
    %v1193 = vld [vmem:[#allocation10 + $0xc0] sm:$0xff]
    %v1194 = vld [vmem:[#allocation10 + $0xc8] sm:$0xff]
    %v1195 = vld [vmem:[#allocation10 + $0xd0] sm:$0xff]
    %v1196 = vld [vmem:[#allocation10 + $0xd8] sm:$0xff]
    %v1197 = vld [vmem:[#allocation10 + $0xe0] sm:$0xff]
    %v1198 = vld [vmem:[#allocation10 + $0xe8] sm:$0xff]
    %v1199 = vld [vmem:[#allocation10 + $0xf0] sm:$0xff]
    %v1200 = vld [vmem:[#allocation10 + $0xf8] sm:$0xff]
    %v1201 = vld [vmem:[#allocation10 + $0x100] sm:$0xff]
    %v1202 = vld [vmem:[#allocation10 + $0x108] sm:$0xff]
    %v1203 = vld [vmem:[#allocation10 + $0x110] sm:$0xff]
    %v1204 = vld [vmem:[#allocation10 + $0x118] sm:$0xff]
    %v1205 = vld [vmem:[#allocation10 + $0x120] sm:$0xff]
    %v1206 = vld [vmem:[#allocation10 + $0x128] sm:$0xff]
    %v1207 = vld [vmem:[#allocation10 + $0x130] sm:$0xff]
    %v1208 = vld [vmem:[#allocation10 + $0x138] sm:$0xff]
    %v1209 = vld [vmem:[#allocation10 + $0x140] sm:$0xff]
    %v1210 = vld [vmem:[#allocation10 + $0x148] sm:$0xff]
    %v1211 = vld [vmem:[#allocation10 + $0x150] sm:$0xff]
    %v1212 = vld [vmem:[#allocation10 + $0x158] sm:$0xff]
    %v1213 = vld [vmem:[#allocation10 + $0x160] sm:$0xff]
    %v1214 = vld [vmem:[#allocation10 + $0x168] sm:$0xff]
    %v1215 = vld [vmem:[#allocation10 + $0x170] sm:$0xff]
    %v1216 = vld [vmem:[#allocation10 + $0x178] sm:$0xff]
    %v1217 = vld [vmem:[%s4] sm:$0x7]
    %v1219 = vperm.slane %v1217, 0
    %v1220 = vperm.slane %v1217, 1
    %v1221 = vperm.slane %v1217, 2
    %1225 = vmatpush.msra.mxu0 %v1214
    %1226 = vmatpush.msra.mxu0 %v1211
    %1227 = vmatpush.msra.mxu0 %v1208
    %1228 = vmatpush.msra.mxu0 %v1205
    %1229 = vmatpush.msra.mxu0 %v1202
    %1230 = vmatpush.msra.mxu0 %v1199
    %1231 = vmatpush.msra.mxu0 %v1196
    %1232 = vmatpush.msra.mxu0 %v1193
    %1233 = vmatpush.msra.mxu0 %v1190
    %1234 = vmatpush.msra.mxu0 %v1187
    %1235 = vmatpush.msra.mxu0 %v1184
    %1236 = vmatpush.msra.mxu0 %v1181
    %1237 = vmatpush.msra.mxu0 %v1178
    %1238 = vmatpush.msra.mxu0 %v1175
    %1239 = vmatpush.msra.mxu0 %v1172
    %1240 = vmatpush.msra.mxu0 %v1169
    %1241 = vmatmul.f32.gmra.mxu0 %v1168
    %v1242 = vpop.f32.mrf.mxu0
    %v1243 = vadd.f32 %v1219, %v1242
    %1244 = vdwg.mxu0
    %1245 = vmatpush.msra.mxu0 %v1215
    %1246 = vmatpush.msra.mxu0 %v1212
    %1247 = vmatpush.msra.mxu0 %v1209
    %1248 = vmatpush.msra.mxu0 %v1206
    %1249 = vmatpush.msra.mxu0 %v1203
    %1250 = vmatpush.msra.mxu0 %v1200
    %1251 = vmatpush.msra.mxu0 %v1197
    %1252 = vmatpush.msra.mxu0 %v1194
    %1253 = vmatpush.msra.mxu0 %v1191
    %1254 = vmatpush.msra.mxu0 %v1188
    %1255 = vmatpush.msra.mxu0 %v1185
    %1256 = vmatpush.msra.mxu0 %v1182
    %1257 = vmatpush.msra.mxu0 %v1179
    %1258 = vmatpush.msra.mxu0 %v1176
    %1259 = vmatpush.msra.mxu0 %v1173
    %1260 = vmatpush.msra.mxu0 %v1170
    %1261 = vmatmul.f32.gmra.mxu0 %v1168
    %v1262 = vpop.f32.mrf.mxu0
    %v1263 = vadd.f32 %v1220, %v1262
    %1264 = vdwg.mxu0
    %1265 = vmatpush.msra.mxu0 %v1216
    %1266 = vmatpush.msra.mxu0 %v1213
    %1267 = vmatpush.msra.mxu0 %v1210
    %1268 = vmatpush.msra.mxu0 %v1207
    %1269 = vmatpush.msra.mxu0 %v1204
    %1270 = vmatpush.msra.mxu0 %v1201
    %1271 = vmatpush.msra.mxu0 %v1198
    %1272 = vmatpush.msra.mxu0 %v1195
    %1273 = vmatpush.msra.mxu0 %v1192
    %1274 = vmatpush.msra.mxu0 %v1189
    %1275 = vmatpush.msra.mxu0 %v1186
    %1276 = vmatpush.msra.mxu0 %v1183
    %1277 = vmatpush.msra.mxu0 %v1180
    %1278 = vmatpush.msra.mxu0 %v1177
    %1279 = vmatpush.msra.mxu0 %v1174
    %1280 = vmatpush.msra.mxu0 %v1171
    %1281 = vmatmul.f32.gmra.mxu0 %v1168
    %v1282 = vpop.f32.mrf.mxu0
    %v1283 = vadd.f32 %v1221, %v1282
    %1284 = vdwg.mxu0
    %v1285 = vadd.f32 %v1165, %v1243
    %v1286 = vxor.u32 %v1285, 2147483648
    %v1287 = vmul.f32 %v1286, 1.442695
    %v1288 = vpow.pop %v1287
    %v1289 = vadd.f32 %v1288, 1.0
    %v1290 = vrcp.pop %v1289
    %v1291 = vmul.f32 %v1289, %v1290
    %v1292 = vsub.f32 1.0, %v1291
    %v1293 = vmul.f32 %v1290, %v1292
    %v1294 = vadd.f32 %v1290, %v1293
    %vm1295 = vweird.f32 %v1289
    %vm1296 = vweird.f32 %v1290
    %vm1297 = vmor %vm1295, %vm1296
    %v1298 = vsel %vm1297, %v1290, %v1294
    %v1299 = vand.u32 2147483647, %v1289
    %vm1300 = vcmp.eq.f32.partialorder %v1299, 8.507059e+37
    %v1301 = vand.u32 %v1289, 2147483648
    %v1302 = vor.u32 1.1754944e-38, %v1301
    %v1303 = vsel %vm1300, %v1302, %v1298
    %v1304 = vmul.f32 1.0, %v1303
    %v1305 = vadd.f32 %v1166, %v1263
    %v1306 = vxor.u32 %v1305, 2147483648
    %v1307 = vmul.f32 %v1306, 1.442695
    %v1308 = vpow.pop %v1307
    %v1309 = vadd.f32 %v1308, 1.0
    %v1310 = vrcp.pop %v1309
    %v1311 = vmul.f32 %v1309, %v1310
    %v1312 = vsub.f32 1.0, %v1311
    %v1313 = vmul.f32 %v1310, %v1312
    %v1314 = vadd.f32 %v1310, %v1313
    %vm1315 = vweird.f32 %v1309
    %vm1316 = vweird.f32 %v1310
    %vm1317 = vmor %vm1315, %vm1316
    %v1318 = vsel %vm1317, %v1310, %v1314
    %v1319 = vand.u32 2147483647, %v1309
    %vm1320 = vcmp.eq.f32.partialorder %v1319, 8.507059e+37
    %v1321 = vand.u32 %v1309, 2147483648
    %v1322 = vor.u32 1.1754944e-38, %v1321
    %v1323 = vsel %vm1320, %v1322, %v1318
    %v1324 = vmul.f32 1.0, %v1323
    %v1325 = vmul.f32 %v1304, %v1283
    %v1326 = vadd.f32 %v1167, %v1325
    %v1327 = vtanh.pop %v1326
    %v1328 = vsub.f32 1.0, %v1324
    %v1329 = vmul.f32 %v1328, %v1327
    %v1330 = vmul.f32 %v1324, %v1168
    %v1331 = vadd.f32 %v1329, %v1330
    %1332 = vst [vmem:[#allocation2] sm:$0xff] %v1331
    %s1333 = scalar_lea.vmem [#allocation12], 40
    %1334 = vst [vmem:[%s1333] sm:$0xff] %v1331
    %s1335 = smul.u32 6, 3
    %s1336 = smul.addr %s1335, 8
    %s1337 = scalar_lea.vmem [#allocation3], %s1336
    %v1338 = vld [vmem:[%s1337] sm:$0xff]
    %v1339 = vld [vmem:[%s1337 + $0x8] sm:$0xff]
    %v1340 = vld [vmem:[%s1337 + $0x10] sm:$0xff]
    %v1341 = vld [vmem:[#allocation2] sm:$0xff]
    %v1342 = vld [vmem:[#allocation10] sm:$0xff]
    %v1343 = vld [vmem:[#allocation10 + $0x8] sm:$0xff]
    %v1344 = vld [vmem:[#allocation10 + $0x10] sm:$0xff]
    %v1345 = vld [vmem:[#allocation10 + $0x18] sm:$0xff]
    %v1346 = vld [vmem:[#allocation10 + $0x20] sm:$0xff]
    %v1347 = vld [vmem:[#allocation10 + $0x28] sm:$0xff]
    %v1348 = vld [vmem:[#allocation10 + $0x30] sm:$0xff]
    %v1349 = vld [vmem:[#allocation10 + $0x38] sm:$0xff]
    %v1350 = vld [vmem:[#allocation10 + $0x40] sm:$0xff]
    %v1351 = vld [vmem:[#allocation10 + $0x48] sm:$0xff]
    %v1352 = vld [vmem:[#allocation10 + $0x50] sm:$0xff]
    %v1353 = vld [vmem:[#allocation10 + $0x58] sm:$0xff]
    %v1354 = vld [vmem:[#allocation10 + $0x60] sm:$0xff]
    %v1355 = vld [vmem:[#allocation10 + $0x68] sm:$0xff]
    %v1356 = vld [vmem:[#allocation10 + $0x70] sm:$0xff]
    %v1357 = vld [vmem:[#allocation10 + $0x78] sm:$0xff]
    %v1358 = vld [vmem:[#allocation10 + $0x80] sm:$0xff]
    %v1359 = vld [vmem:[#allocation10 + $0x88] sm:$0xff]
    %v1360 = vld [vmem:[#allocation10 + $0x90] sm:$0xff]
    %v1361 = vld [vmem:[#allocation10 + $0x98] sm:$0xff]
    %v1362 = vld [vmem:[#allocation10 + $0xa0] sm:$0xff]
    %v1363 = vld [vmem:[#allocation10 + $0xa8] sm:$0xff]
    %v1364 = vld [vmem:[#allocation10 + $0xb0] sm:$0xff]
    %v1365 = vld [vmem:[#allocation10 + $0xb8] sm:$0xff]
    %v1366 = vld [vmem:[#allocation10 + $0xc0] sm:$0xff]
    %v1367 = vld [vmem:[#allocation10 + $0xc8] sm:$0xff]
    %v1368 = vld [vmem:[#allocation10 + $0xd0] sm:$0xff]
    %v1369 = vld [vmem:[#allocation10 + $0xd8] sm:$0xff]
    %v1370 = vld [vmem:[#allocation10 + $0xe0] sm:$0xff]
    %v1371 = vld [vmem:[#allocation10 + $0xe8] sm:$0xff]
    %v1372 = vld [vmem:[#allocation10 + $0xf0] sm:$0xff]
    %v1373 = vld [vmem:[#allocation10 + $0xf8] sm:$0xff]
    %v1374 = vld [vmem:[#allocation10 + $0x100] sm:$0xff]
    %v1375 = vld [vmem:[#allocation10 + $0x108] sm:$0xff]
    %v1376 = vld [vmem:[#allocation10 + $0x110] sm:$0xff]
    %v1377 = vld [vmem:[#allocation10 + $0x118] sm:$0xff]
    %v1378 = vld [vmem:[#allocation10 + $0x120] sm:$0xff]
    %v1379 = vld [vmem:[#allocation10 + $0x128] sm:$0xff]
    %v1380 = vld [vmem:[#allocation10 + $0x130] sm:$0xff]
    %v1381 = vld [vmem:[#allocation10 + $0x138] sm:$0xff]
    %v1382 = vld [vmem:[#allocation10 + $0x140] sm:$0xff]
    %v1383 = vld [vmem:[#allocation10 + $0x148] sm:$0xff]
    %v1384 = vld [vmem:[#allocation10 + $0x150] sm:$0xff]
    %v1385 = vld [vmem:[#allocation10 + $0x158] sm:$0xff]
    %v1386 = vld [vmem:[#allocation10 + $0x160] sm:$0xff]
    %v1387 = vld [vmem:[#allocation10 + $0x168] sm:$0xff]
    %v1388 = vld [vmem:[#allocation10 + $0x170] sm:$0xff]
    %v1389 = vld [vmem:[#allocation10 + $0x178] sm:$0xff]
    %v1390 = vld [vmem:[%s4] sm:$0x7]
    %v1392 = vperm.slane %v1390, 0
    %v1393 = vperm.slane %v1390, 1
    %v1394 = vperm.slane %v1390, 2
    %1398 = vmatpush.msra.mxu0 %v1387
    %1399 = vmatpush.msra.mxu0 %v1384
    %1400 = vmatpush.msra.mxu0 %v1381
    %1401 = vmatpush.msra.mxu0 %v1378
    %1402 = vmatpush.msra.mxu0 %v1375
    %1403 = vmatpush.msra.mxu0 %v1372
    %1404 = vmatpush.msra.mxu0 %v1369
    %1405 = vmatpush.msra.mxu0 %v1366
    %1406 = vmatpush.msra.mxu0 %v1363
    %1407 = vmatpush.msra.mxu0 %v1360
    %1408 = vmatpush.msra.mxu0 %v1357
    %1409 = vmatpush.msra.mxu0 %v1354
    %1410 = vmatpush.msra.mxu0 %v1351
    %1411 = vmatpush.msra.mxu0 %v1348
    %1412 = vmatpush.msra.mxu0 %v1345
    %1413 = vmatpush.msra.mxu0 %v1342
    %1414 = vmatmul.f32.gmra.mxu0 %v1341
    %v1415 = vpop.f32.mrf.mxu0
    %v1416 = vadd.f32 %v1392, %v1415
    %1417 = vdwg.mxu0
    %1418 = vmatpush.msra.mxu0 %v1388
    %1419 = vmatpush.msra.mxu0 %v1385
    %1420 = vmatpush.msra.mxu0 %v1382
    %1421 = vmatpush.msra.mxu0 %v1379
    %1422 = vmatpush.msra.mxu0 %v1376
    %1423 = vmatpush.msra.mxu0 %v1373
    %1424 = vmatpush.msra.mxu0 %v1370
    %1425 = vmatpush.msra.mxu0 %v1367
    %1426 = vmatpush.msra.mxu0 %v1364
    %1427 = vmatpush.msra.mxu0 %v1361
    %1428 = vmatpush.msra.mxu0 %v1358
    %1429 = vmatpush.msra.mxu0 %v1355
    %1430 = vmatpush.msra.mxu0 %v1352
    %1431 = vmatpush.msra.mxu0 %v1349
    %1432 = vmatpush.msra.mxu0 %v1346
    %1433 = vmatpush.msra.mxu0 %v1343
    %1434 = vmatmul.f32.gmra.mxu0 %v1341
    %v1435 = vpop.f32.mrf.mxu0
    %v1436 = vadd.f32 %v1393, %v1435
    %1437 = vdwg.mxu0
    %1438 = vmatpush.msra.mxu0 %v1389
    %1439 = vmatpush.msra.mxu0 %v1386
    %1440 = vmatpush.msra.mxu0 %v1383
    %1441 = vmatpush.msra.mxu0 %v1380
    %1442 = vmatpush.msra.mxu0 %v1377
    %1443 = vmatpush.msra.mxu0 %v1374
    %1444 = vmatpush.msra.mxu0 %v1371
    %1445 = vmatpush.msra.mxu0 %v1368
    %1446 = vmatpush.msra.mxu0 %v1365
    %1447 = vmatpush.msra.mxu0 %v1362
    %1448 = vmatpush.msra.mxu0 %v1359
    %1449 = vmatpush.msra.mxu0 %v1356
    %1450 = vmatpush.msra.mxu0 %v1353
    %1451 = vmatpush.msra.mxu0 %v1350
    %1452 = vmatpush.msra.mxu0 %v1347
    %1453 = vmatpush.msra.mxu0 %v1344
    %1454 = vmatmul.f32.gmra.mxu0 %v1341
    %v1455 = vpop.f32.mrf.mxu0
    %v1456 = vadd.f32 %v1394, %v1455
    %1457 = vdwg.mxu0
    %v1458 = vadd.f32 %v1338, %v1416
    %v1459 = vxor.u32 %v1458, 2147483648
    %v1460 = vmul.f32 %v1459, 1.442695
    %v1461 = vpow.pop %v1460
    %v1462 = vadd.f32 %v1461, 1.0
    %v1463 = vrcp.pop %v1462
    %v1464 = vmul.f32 %v1462, %v1463
    %v1465 = vsub.f32 1.0, %v1464
    %v1466 = vmul.f32 %v1463, %v1465
    %v1467 = vadd.f32 %v1463, %v1466
    %vm1468 = vweird.f32 %v1462
    %vm1469 = vweird.f32 %v1463
    %vm1470 = vmor %vm1468, %vm1469
    %v1471 = vsel %vm1470, %v1463, %v1467
    %v1472 = vand.u32 2147483647, %v1462
    %vm1473 = vcmp.eq.f32.partialorder %v1472, 8.507059e+37
    %v1474 = vand.u32 %v1462, 2147483648
    %v1475 = vor.u32 1.1754944e-38, %v1474
    %v1476 = vsel %vm1473, %v1475, %v1471
    %v1477 = vmul.f32 1.0, %v1476
    %v1478 = vadd.f32 %v1339, %v1436
    %v1479 = vxor.u32 %v1478, 2147483648
    %v1480 = vmul.f32 %v1479, 1.442695
    %v1481 = vpow.pop %v1480
    %v1482 = vadd.f32 %v1481, 1.0
    %v1483 = vrcp.pop %v1482
    %v1484 = vmul.f32 %v1482, %v1483
    %v1485 = vsub.f32 1.0, %v1484
    %v1486 = vmul.f32 %v1483, %v1485
    %v1487 = vadd.f32 %v1483, %v1486
    %vm1488 = vweird.f32 %v1482
    %vm1489 = vweird.f32 %v1483
    %vm1490 = vmor %vm1488, %vm1489
    %v1491 = vsel %vm1490, %v1483, %v1487
    %v1492 = vand.u32 2147483647, %v1482
    %vm1493 = vcmp.eq.f32.partialorder %v1492, 8.507059e+37
    %v1494 = vand.u32 %v1482, 2147483648
    %v1495 = vor.u32 1.1754944e-38, %v1494
    %v1496 = vsel %vm1493, %v1495, %v1491
    %v1497 = vmul.f32 1.0, %v1496
    %v1498 = vmul.f32 %v1477, %v1456
    %v1499 = vadd.f32 %v1340, %v1498
    %v1500 = vtanh.pop %v1499
    %v1501 = vsub.f32 1.0, %v1497
    %v1502 = vmul.f32 %v1501, %v1500
    %v1503 = vmul.f32 %v1497, %v1341
    %v1504 = vadd.f32 %v1502, %v1503
    %1505 = vst [vmem:[#allocation2] sm:$0xff] %v1504
    %s1506 = scalar_lea.vmem [#allocation12], 48
    %1507 = vst [vmem:[%s1506] sm:$0xff] %v1504
    %s1508 = smul.u32 7, 3
    %s1509 = smul.addr %s1508, 8
    %s1510 = scalar_lea.vmem [#allocation3], %s1509
    %v1511 = vld [vmem:[%s1510] sm:$0xff]
    %v1512 = vld [vmem:[%s1510 + $0x8] sm:$0xff]
    %v1513 = vld [vmem:[%s1510 + $0x10] sm:$0xff]
    %v1514 = vld [vmem:[#allocation2] sm:$0xff]
    %v1515 = vld [vmem:[#allocation10] sm:$0xff]
    %v1516 = vld [vmem:[#allocation10 + $0x8] sm:$0xff]
    %v1517 = vld [vmem:[#allocation10 + $0x10] sm:$0xff]
    %v1518 = vld [vmem:[#allocation10 + $0x18] sm:$0xff]
    %v1519 = vld [vmem:[#allocation10 + $0x20] sm:$0xff]
    %v1520 = vld [vmem:[#allocation10 + $0x28] sm:$0xff]
    %v1521 = vld [vmem:[#allocation10 + $0x30] sm:$0xff]
    %v1522 = vld [vmem:[#allocation10 + $0x38] sm:$0xff]
    %v1523 = vld [vmem:[#allocation10 + $0x40] sm:$0xff]
    %v1524 = vld [vmem:[#allocation10 + $0x48] sm:$0xff]
    %v1525 = vld [vmem:[#allocation10 + $0x50] sm:$0xff]
    %v1526 = vld [vmem:[#allocation10 + $0x58] sm:$0xff]
    %v1527 = vld [vmem:[#allocation10 + $0x60] sm:$0xff]
    %v1528 = vld [vmem:[#allocation10 + $0x68] sm:$0xff]
    %v1529 = vld [vmem:[#allocation10 + $0x70] sm:$0xff]
    %v1530 = vld [vmem:[#allocation10 + $0x78] sm:$0xff]
    %v1531 = vld [vmem:[#allocation10 + $0x80] sm:$0xff]
    %v1532 = vld [vmem:[#allocation10 + $0x88] sm:$0xff]
    %v1533 = vld [vmem:[#allocation10 + $0x90] sm:$0xff]
    %v1534 = vld [vmem:[#allocation10 + $0x98] sm:$0xff]
    %v1535 = vld [vmem:[#allocation10 + $0xa0] sm:$0xff]
    %v1536 = vld [vmem:[#allocation10 + $0xa8] sm:$0xff]
    %v1537 = vld [vmem:[#allocation10 + $0xb0] sm:$0xff]
    %v1538 = vld [vmem:[#allocation10 + $0xb8] sm:$0xff]
    %v1539 = vld [vmem:[#allocation10 + $0xc0] sm:$0xff]
    %v1540 = vld [vmem:[#allocation10 + $0xc8] sm:$0xff]
    %v1541 = vld [vmem:[#allocation10 + $0xd0] sm:$0xff]
    %v1542 = vld [vmem:[#allocation10 + $0xd8] sm:$0xff]
    %v1543 = vld [vmem:[#allocation10 + $0xe0] sm:$0xff]
    %v1544 = vld [vmem:[#allocation10 + $0xe8] sm:$0xff]
    %v1545 = vld [vmem:[#allocation10 + $0xf0] sm:$0xff]
    %v1546 = vld [vmem:[#allocation10 + $0xf8] sm:$0xff]
    %v1547 = vld [vmem:[#allocation10 + $0x100] sm:$0xff]
    %v1548 = vld [vmem:[#allocation10 + $0x108] sm:$0xff]
    %v1549 = vld [vmem:[#allocation10 + $0x110] sm:$0xff]
    %v1550 = vld [vmem:[#allocation10 + $0x118] sm:$0xff]
    %v1551 = vld [vmem:[#allocation10 + $0x120] sm:$0xff]
    %v1552 = vld [vmem:[#allocation10 + $0x128] sm:$0xff]
    %v1553 = vld [vmem:[#allocation10 + $0x130] sm:$0xff]
    %v1554 = vld [vmem:[#allocation10 + $0x138] sm:$0xff]
    %v1555 = vld [vmem:[#allocation10 + $0x140] sm:$0xff]
    %v1556 = vld [vmem:[#allocation10 + $0x148] sm:$0xff]
    %v1557 = vld [vmem:[#allocation10 + $0x150] sm:$0xff]
    %v1558 = vld [vmem:[#allocation10 + $0x158] sm:$0xff]
    %v1559 = vld [vmem:[#allocation10 + $0x160] sm:$0xff]
    %v1560 = vld [vmem:[#allocation10 + $0x168] sm:$0xff]
    %v1561 = vld [vmem:[#allocation10 + $0x170] sm:$0xff]
    %v1562 = vld [vmem:[#allocation10 + $0x178] sm:$0xff]
    %v1563 = vld [vmem:[%s4] sm:$0x7]
    %v1565 = vperm.slane %v1563, 0
    %v1566 = vperm.slane %v1563, 1
    %v1567 = vperm.slane %v1563, 2
    %1571 = vmatpush.msra.mxu0 %v1560
    %1572 = vmatpush.msra.mxu0 %v1557
    %1573 = vmatpush.msra.mxu0 %v1554
    %1574 = vmatpush.msra.mxu0 %v1551
    %1575 = vmatpush.msra.mxu0 %v1548
    %1576 = vmatpush.msra.mxu0 %v1545
    %1577 = vmatpush.msra.mxu0 %v1542
    %1578 = vmatpush.msra.mxu0 %v1539
    %1579 = vmatpush.msra.mxu0 %v1536
    %1580 = vmatpush.msra.mxu0 %v1533
    %1581 = vmatpush.msra.mxu0 %v1530
    %1582 = vmatpush.msra.mxu0 %v1527
    %1583 = vmatpush.msra.mxu0 %v1524
    %1584 = vmatpush.msra.mxu0 %v1521
    %1585 = vmatpush.msra.mxu0 %v1518
    %1586 = vmatpush.msra.mxu0 %v1515
    %1587 = vmatmul.f32.gmra.mxu0 %v1514
    %v1588 = vpop.f32.mrf.mxu0
    %v1589 = vadd.f32 %v1565, %v1588
    %1590 = vdwg.mxu0
    %1591 = vmatpush.msra.mxu0 %v1561
    %1592 = vmatpush.msra.mxu0 %v1558
    %1593 = vmatpush.msra.mxu0 %v1555
    %1594 = vmatpush.msra.mxu0 %v1552
    %1595 = vmatpush.msra.mxu0 %v1549
    %1596 = vmatpush.msra.mxu0 %v1546
    %1597 = vmatpush.msra.mxu0 %v1543
    %1598 = vmatpush.msra.mxu0 %v1540
    %1599 = vmatpush.msra.mxu0 %v1537
    %1600 = vmatpush.msra.mxu0 %v1534
    %1601 = vmatpush.msra.mxu0 %v1531
    %1602 = vmatpush.msra.mxu0 %v1528
    %1603 = vmatpush.msra.mxu0 %v1525
    %1604 = vmatpush.msra.mxu0 %v1522
    %1605 = vmatpush.msra.mxu0 %v1519
    %1606 = vmatpush.msra.mxu0 %v1516
    %1607 = vmatmul.f32.gmra.mxu0 %v1514
    %v1608 = vpop.f32.mrf.mxu0
    %v1609 = vadd.f32 %v1566, %v1608
    %1610 = vdwg.mxu0
    %1611 = vmatpush.msra.mxu0 %v1562
    %1612 = vmatpush.msra.mxu0 %v1559
    %1613 = vmatpush.msra.mxu0 %v1556
    %1614 = vmatpush.msra.mxu0 %v1553
    %1615 = vmatpush.msra.mxu0 %v1550
    %1616 = vmatpush.msra.mxu0 %v1547
    %1617 = vmatpush.msra.mxu0 %v1544
    %1618 = vmatpush.msra.mxu0 %v1541
    %1619 = vmatpush.msra.mxu0 %v1538
    %1620 = vmatpush.msra.mxu0 %v1535
    %1621 = vmatpush.msra.mxu0 %v1532
    %1622 = vmatpush.msra.mxu0 %v1529
    %1623 = vmatpush.msra.mxu0 %v1526
    %1624 = vmatpush.msra.mxu0 %v1523
    %1625 = vmatpush.msra.mxu0 %v1520
    %1626 = vmatpush.msra.mxu0 %v1517
    %1627 = vmatmul.f32.gmra.mxu0 %v1514
    %v1628 = vpop.f32.mrf.mxu0
    %v1629 = vadd.f32 %v1567, %v1628
    %1630 = vdwg.mxu0
    %v1631 = vadd.f32 %v1511, %v1589
    %v1632 = vxor.u32 %v1631, 2147483648
    %v1633 = vmul.f32 %v1632, 1.442695
    %v1634 = vpow.pop %v1633
    %v1635 = vadd.f32 %v1634, 1.0
    %v1636 = vrcp.pop %v1635
    %v1637 = vmul.f32 %v1635, %v1636
    %v1638 = vsub.f32 1.0, %v1637
    %v1639 = vmul.f32 %v1636, %v1638
    %v1640 = vadd.f32 %v1636, %v1639
    %vm1641 = vweird.f32 %v1635
    %vm1642 = vweird.f32 %v1636
    %vm1643 = vmor %vm1641, %vm1642
    %v1644 = vsel %vm1643, %v1636, %v1640
    %v1645 = vand.u32 2147483647, %v1635
    %vm1646 = vcmp.eq.f32.partialorder %v1645, 8.507059e+37
    %v1647 = vand.u32 %v1635, 2147483648
    %v1648 = vor.u32 1.1754944e-38, %v1647
    %v1649 = vsel %vm1646, %v1648, %v1644
    %v1650 = vmul.f32 1.0, %v1649
    %v1651 = vadd.f32 %v1512, %v1609
    %v1652 = vxor.u32 %v1651, 2147483648
    %v1653 = vmul.f32 %v1652, 1.442695
    %v1654 = vpow.pop %v1653
    %v1655 = vadd.f32 %v1654, 1.0
    %v1656 = vrcp.pop %v1655
    %v1657 = vmul.f32 %v1655, %v1656
    %v1658 = vsub.f32 1.0, %v1657
    %v1659 = vmul.f32 %v1656, %v1658
    %v1660 = vadd.f32 %v1656, %v1659
    %vm1661 = vweird.f32 %v1655
    %vm1662 = vweird.f32 %v1656
    %vm1663 = vmor %vm1661, %vm1662
    %v1664 = vsel %vm1663, %v1656, %v1660
    %v1665 = vand.u32 2147483647, %v1655
    %vm1666 = vcmp.eq.f32.partialorder %v1665, 8.507059e+37
    %v1667 = vand.u32 %v1655, 2147483648
    %v1668 = vor.u32 1.1754944e-38, %v1667
    %v1669 = vsel %vm1666, %v1668, %v1664
    %v1670 = vmul.f32 1.0, %v1669
    %v1671 = vmul.f32 %v1650, %v1629
    %v1672 = vadd.f32 %v1513, %v1671
    %v1673 = vtanh.pop %v1672
    %v1674 = vsub.f32 1.0, %v1670
    %v1675 = vmul.f32 %v1674, %v1673
    %v1676 = vmul.f32 %v1670, %v1514
    %v1677 = vadd.f32 %v1675, %v1676
    %1678 = vst [vmem:[#allocation2] sm:$0xff] %v1677
    %s1679 = scalar_lea.vmem [#allocation12], 56
    %1680 = vst [vmem:[%s1679] sm:$0xff] %v1677
    // Predicated region
    $region42: #{tpu_custom_call.1} parent=1 // pred_check
      _
    $region43: #{tpu_custom_call.1} parent=1 // pred_check_branch
      %1682 = sbr.rel (0) target = $region45
    $region44: #{tpu_custom_call.1} parent=1 // pred_region
      %1684 = vsyncadd [#allocation6], 0
      %s1685 = sshll.u32 [#allocation12], 4
      %s1686 = int_to_ptr.vmem [resolvable:$true] %s1685
      %s1687 = sshll.u32 %s5, 4
      %s1688 = int_to_ptr.hbm [resolvable:$true] %s1687
      %1693 = dma.vmem_to_hbm [thread:$0]  %s1686, 1024, %s1688, [#allocation6], 128, 128, 8
    $region45: #{tpu_custom_call.1} parent=1 // pred_fallthru
      _
    // Predicated region
    $region46: #{tpu_custom_call.1} parent=1 // pred_check
      _
    $region47: #{tpu_custom_call.1} parent=1 // pred_check_branch
      %1695 = sbr.rel (0) target = $region49
    $region48: #{tpu_custom_call.1} parent=1 // pred_region
      %1697 = dma.done [#allocation6], 1024
    $region49: #{tpu_custom_call.1} parent=1 // pred_fallthru
      _
    %1698 = vsyncpa [#allocation5], 1
    %1699 = vsyncpa [#allocation8], 1
    %1700 = vsyncpa [#allocation11], 1
    %1701 = vsyncpa [#allocation6], 1

</llo_original>
